<compile_context>
chip_gen: v7x
topology: tpu7x:2x2x1
jax: 0.10.0
libtpu: 0.0.40
codegen_flags: <defaults>
</compile_context>

<pallas_src>
import numpy as np

import jax
import jax.numpy as jnp
from jax.experimental import pallas as pl
from jax.experimental.pallas import tpu as pltpu


def _mixconv_kernel(x_ref, w_ref, b_ref, o_ref):
    # x_ref: (1, TH+2, W+2, C1) f32, zero-padded halo window of input rows
    # w_ref: (9*C1, C2)         combined conv weight (matmul dtype), BN scale
    #                           folded in; rows are (ky, kx, cin)-major; the
    #                           1x1 group occupies only the center-tap rows of
    #                           its columns, zeros elsewhere.
    # b_ref: (1, C2) f32        folded BN bias (beta - mean*scale)
    # o_ref: (1, TH*W, C2) f32  output rows, spatially flattened
    th = x_ref.shape[1] - 2
    w = x_ref.shape[2] - 2
    c1 = x_ref.shape[3]

    xpad = x_ref[0]                                   # (TH+2, W+2, C1) f32
    x_mm = xpad.astype(w_ref.dtype)                   # cast matmul operand only

    # im2col with 3 sublane-shifted copies + two 3-way lane concats:
    #   shifted3[r, c, dx*C1+cin] = x_mm[r, c+dx, cin]          (TH+2, W, 3*C1)
    #   lhs[r, c, dy*3*C1+dx*C1+cin] = x_mm[r+dy, c+dx, cin]    (TH,   W, 9*C1)
    # Last-axis order is (ky, kx, cin)-major, matching w_ref's row order.
    shifted3 = jnp.concatenate(
        [x_mm[:, dx:dx + w, :] for dx in range(3)], axis=-1)
    lhs = jnp.concatenate(
        [shifted3[dy:dy + th, :, :] for dy in range(3)], axis=-1)
    lhs = lhs.reshape(th * w, 9 * c1)

    # ONE MXU matmul covers both conv groups (f32 accumulation).
    y = jnp.dot(lhs, w_ref[...], preferred_element_type=jnp.float32)

    # bias + LeakyReLU(0.1) + residual, all f32, single lane-dense store.
    z = y + b_ref[...]
    z = jnp.where(z >= 0, z, 0.1 * z)
    # Residual must use the untouched f32 center rows (PyTorch adds full-
    # precision x), so the bf16 center tap inside `lhs` cannot be reused here.
    xres = xpad[1:th + 1, 1:w + 1, :].reshape(th * w, c1)
    o_ref[0, :, :] = (z + xres).astype(o_ref.dtype)


def _vmem_budget():
    """Generation-aware (limit, per-step budget): ~96 MiB / 48 MiB on v5e/v6e
    (128 MiB physical VMEM), ~48 MiB / 24 MiB on v7x (64 MiB per TC)."""
    try:
        cap = int(getattr(pltpu.get_tpu_info(), "vmem_capacity_bytes",
                          128 << 20))
    except Exception:
        cap = 128 << 20
    vmem_limit = min(96 << 20, (cap * 3) // 4)
    return vmem_limit, vmem_limit // 2


def _choose_row_tile(H, W, C1, C2, mm_itemsize, vmem_budget_bytes):
    """Largest divisor th of H with th <= H//2 (>= 2 row tiles: pipeline
    overlap + a second 'parallel' axis for v7x megacore), (th*W) % 8 == 0 (the
    flat (th*W, C2) output block needs a sublane-aligned second-to-last dim),
    and an estimated per-step working set under the budget. If nothing fits
    the budget, fall back to the SMALLEST admissible divisor (best effort,
    minimal working set) instead of the whole image."""
    def est(th):
        in_blk = 2 * (th + 2) * (W + 2) * C1 * 4           # f32 input, dbl-buf
        out_blk = 2 * th * W * C2 * 4                       # f32 output, dbl-buf
        shifted3 = (th + 2) * W * 3 * C1 * mm_itemsize      # im2col stage 1
        lhs = th * W * 9 * C1 * mm_itemsize                 # im2col LHS (x1)
        temps = th * W * (C2 + C1) * 4                      # acc + f32 residual
        return in_blk + out_blk + shifted3 + lhs + temps

    admissible = [th for th in range(1, H // 2 + 1)
                  if H % th == 0 and (th * W) % 8 == 0]
    fitting = [th for th in admissible if est(th) <= vmem_budget_bytes]
    if fitting:
        return max(fitting)
    if admissible:
        return min(admissible)
    return H   # no legal split (e.g. W not a multiple of 8 and H prime)


def mixconv2d_forward(x_nchw, w1_oi, w3_oihw, gamma, beta, run_mean, run_var,
                      eps=1e-5, compute_dtype=jnp.bfloat16, row_tile=None):
    """MixConv2d forward. x_nchw: (N, C1, H, W) f32 -> (N, C2, H, W) f32.

    compute_dtype: dtype of the matmul operands (bf16 feeds the fast MXU path);
    the residual and the bias/LeakyReLU epilogue are always f32.
    """
    N, C1, H, W = x_nchw.shape
    c1_out = w1_oi.shape[0]
    c3_out = w3_oihw.shape[0]
    C2 = c1_out + c3_out
    assert C1 == C2, "residual in MixConv2d.forward requires c1 == c2"

    # --- wrapper glue (plain JAX) -----------------------------------------
    # The NCHW->NHWC relayout and the 1px halo pad fuse into one XLA copy pass.
    # TODO(synk): carry NHWC through the surrounding model (and let consumers
    # accept bf16 output) to drop the relayout / transpose-back entirely --
    # the largest remaining end-to-end cost around this memory-bound kernel.
    # TODO(synk): absorbing the halo pad into the kernel (masked boundary
    # taps) would also drop the W+2 sublane extent; kept in the wrapper to
    # preserve the simple auto-pipelined halo BlockSpec.
    x_pad = jnp.pad(jnp.transpose(x_nchw, (0, 2, 3, 1)),
                    ((0, 0), (1, 1), (1, 1), (0, 0)))     # f32 (N, H+2, W+2, C1)

    # Fold inference-mode BN scale into the conv weights (f32, before the
    # compute-dtype cast); only the bias remains in the epilogue. Pack BOTH
    # groups into ONE (9*C1, C2) matrix with (ky, kx, cin)-major rows; the 1x1
    # group lives only in the center-tap rows [4*C1:5*C1) of its columns.
    scale = (gamma / jnp.sqrt(run_var + eps)).astype(jnp.float32)
    bias = (beta - run_mean * scale).astype(jnp.float32).reshape(1, C2)

    w1_s = (w1_oi * scale[:c1_out, None]).astype(jnp.float32)        # (c1_out, C1)
    w3_s = (w3_oihw * scale[c1_out:, None, None, None]).astype(jnp.float32)

    w_comb = jnp.zeros((9 * C1, C2), jnp.float32)
    w_comb = w_comb.at[4 * C1:5 * C1, :c1_out].set(jnp.transpose(w1_s, (1, 0)))
    w_comb = w_comb.at[:, c1_out:].set(
        jnp.transpose(w3_s, (2, 3, 1, 0)).reshape(9 * C1, c3_out))
    w_comb = w_comb.astype(compute_dtype)

    vmem_limit, budget = _vmem_budget()
    th = row_tile if row_tile is not None else _choose_row_tile(
        H, W, C1, C2, np.dtype(compute_dtype).itemsize, budget)
    assert H % th == 0
    n_row_tiles = H // th

    if n_row_tiles == 1:
        # Whole image per step: plain Blocked spec (block == full padded dims).
        x_spec = pl.BlockSpec((1, H + 2, W + 2, C1), lambda n, h: (n, 0, 0, 0))
    else:
        # Overlapping halo windows: Element-indexed rows, offset by th per
        # step so consecutive row tiles share the 2-row halo.
        x_spec = pl.BlockSpec((1, pl.Element(th + 2), W + 2, C1),
                              lambda n, h: (n, h * th, 0, 0))

    out_flat = pl.pallas_call(
        _mixconv_kernel,
        out_shape=jax.ShapeDtypeStruct((N, H * W, C2), jnp.float32),
        grid_spec=pltpu.PrefetchScalarGridSpec(
            num_scalar_prefetch=0,
            grid=(N, n_row_tiles),
            in_specs=[
                x_spec,
                pl.BlockSpec((9 * C1, C2), lambda n, h: (0, 0)),
                pl.BlockSpec((1, C2), lambda n, h: (0, 0)),
            ],
            out_specs=pl.BlockSpec((1, th * W, C2), lambda n, h: (n, h, 0)),
        ),
        compiler_params=pltpu.CompilerParams(
            dimension_semantics=("parallel", "parallel"),
            vmem_limit_bytes=vmem_limit),
    )(x_pad, w_comb, bias)

    out_nhwc = out_flat.reshape(N, H, W, C2)        # metadata-only reshape
    return jnp.transpose(out_nhwc, (0, 3, 1, 2))    # back to NCHW


def _reference_nchw(x, w1_oihw, w3_oihw, gamma, beta, run_mean, run_var,
                    eps=1e-5, mm_dtype=jnp.float32):
    """Pure-JAX reference matching the PyTorch module in eval() mode, with the
    conv operands rounded to mm_dtype exactly like the kernel (BN scale folded
    into the weights before rounding; residual stays full-precision f32)."""
    c1_out = w1_oihw.shape[0]
    scale = gamma / jnp.sqrt(run_var + eps)
    bias = beta - run_mean * scale
    w1_s = w1_oihw * scale[:c1_out].reshape(-1, 1, 1, 1)
    w3_s = w3_oihw * scale[c1_out:].reshape(-1, 1, 1, 1)
    q = lambda a: a.astype(mm_dtype).astype(jnp.float32)
    dn = ("NCHW", "OIHW", "NCHW")
    hi = jax.lax.Precision.HIGHEST
    y1 = jax.lax.conv_general_dilated(q(x), q(w1_s), (1, 1), [(0, 0), (0, 0)],
                                      dimension_numbers=dn, precision=hi)
    y3 = jax.lax.conv_general_dilated(q(x), q(w3_s), (1, 1), [(1, 1), (1, 1)],
                                      dimension_numbers=dn, precision=hi)
    y = jnp.concatenate([y1, y3], axis=1) + bias.reshape(1, -1, 1, 1)
    y = jnp.where(y >= 0, y, 0.1 * y)
    return x + y


def _split_channels_equal(c2, groups):
    # mirrors: i = torch.linspace(0, groups - 1e-6, c2).floor(); c_[g]=(i==g).sum()
    i = np.floor(np.linspace(0.0, groups - 1e-6, c2))
    return [int((i == g).sum()) for g in range(groups)]


if __name__ == "__main__":
    N, C1, H, W = 2, 4, 16, 16
    C2 = C1                                  # residual requires c1 == c2
    k = (1, 3)
    c_ = _split_channels_equal(C2, len(k))   # -> [2, 2]

    key = jax.random.PRNGKey(0)
    kx, kw1, kw3, kg, kb, km, kv = jax.random.split(key, 7)

    x = jax.random.normal(kx, (N, C1, H, W), dtype=jnp.float32)

    # Conv weights in PyTorch (out, in, kh, kw) layout, bias=False.
    w1 = jax.random.normal(kw1, (c_[0], C1, 1, 1), dtype=jnp.float32) * 0.1
    w3 = jax.random.normal(kw3, (c_[1], C1, 3, 3), dtype=jnp.float32) * 0.1

    # BatchNorm2d(C2) parameters (deterministic, inference mode).
    gamma = 1.0 + 0.05 * jax.random.normal(kg, (C2,), dtype=jnp.float32)
    beta = 0.05 * jax.random.normal(kb, (C2,), dtype=jnp.float32)
    run_mean = 0.01 * jax.random.normal(km, (C2,), dtype=jnp.float32)
    run_var = 1.0 + 0.1 * jax.nn.softplus(
        jax.random.normal(kv, (C2,), dtype=jnp.float32))

    used_dtype = jnp.bfloat16
    try:
        out = mixconv2d_forward(x, w1[:, :, 0, 0], w3, gamma, beta,
                                run_mean, run_var, compute_dtype=used_dtype)
        out = jax.block_until_ready(out)
    except Exception:
        # Conservative fallback (f32 matmul operands, whole-image row tile) so
        # the script still runs on Pallas builds without Element-indexed halo
        # windows.
        used_dtype = jnp.float32
        out = mixconv2d_forward(x, w1[:, :, 0, 0], w3, gamma, beta,
                                run_mean, run_var, compute_dtype=used_dtype,
                                row_tile=H)
        out = jax.block_until_ready(out)

    # Reference sees the same rounded conv operands the kernel used; the
    # residual is full-precision f32 in both, so the remaining diff is f32
    # accumulation order only.
    ref = _reference_nchw(x, w1, w3, gamma, beta, run_mean, run_var,
                          mm_dtype=used_dtype)
    assert out.shape == (N, C2, H, W)
    np.testing.assert_allclose(np.asarray(out), np.asarray(ref),
                               rtol=2e-3, atol=2e-3)
    print("KERNEL_OK")
</pallas_src>

<mosaic_0001>
module attributes {stable_mosaic.version = 11 : i64} {
  func.func @_mixconv_kernel(%arg0: i32, %arg1: i32, %arg2: memref<1x18x18x4xf32, #tpu.memory_space<vmem>>, %arg3: memref<36x4xf32, #tpu.memory_space<vmem>>, %arg4: memref<1x4xf32, #tpu.memory_space<vmem>>, %arg5: memref<1x256x4xf32, #tpu.memory_space<vmem>>) attributes {dimension_semantics = [#tpu.dimension_semantics<parallel>, #tpu.dimension_semantics<parallel>], iteration_bounds = array<i64: 2, 1>, scalar_prefetch = 0 : i64, scratch_operands = 0 : i64, tpu.core_type = #tpu.core_type<tc>, window_params = [{transform_indices = @transform_0, window_bounds = array<i64: 1, 18, 18, 4>}, {pipeline_mode = #tpu.pipeline_mode<synchronous>, transform_indices = @transform_1, window_bounds = array<i64: 36, 4>}, {pipeline_mode = #tpu.pipeline_mode<synchronous>, transform_indices = @transform_2, window_bounds = array<i64: 1, 4>}, {transform_indices = @transform_3, window_bounds = array<i64: 1, 256, 4>}]} {
    %c0 = arith.constant 0 : index
    %c0_0 = arith.constant 0 : index
    %c0_1 = arith.constant 0 : index
    %c0_2 = arith.constant 0 : index
    %0 = vector.load %arg2[%c0, %c0_0, %c0_1, %c0_2] : memref<1x18x18x4xf32, #tpu.memory_space<vmem>>, vector<1x18x18x4xf32>
    %1 = vector.shape_cast %0 : vector<1x18x18x4xf32> to vector<18x18x4xf32>
    %2 = vector.extract_strided_slice %1 {offsets = [0, 0, 0], sizes = [18, 16, 4], strides = [1, 1, 1]} : vector<18x18x4xf32> to vector<18x16x4xf32>
    %3 = vector.extract_strided_slice %1 {offsets = [0, 1, 0], sizes = [18, 16, 4], strides = [1, 1, 1]} : vector<18x18x4xf32> to vector<18x16x4xf32>
    %4 = vector.extract_strided_slice %1 {offsets = [0, 2, 0], sizes = [18, 16, 4], strides = [1, 1, 1]} : vector<18x18x4xf32> to vector<18x16x4xf32>
    %5 = tpu.concatenate %2, %3, %4 in 2 : vector<18x16x4xf32>, vector<18x16x4xf32>, vector<18x16x4xf32> -> vector<18x16x12xf32>
    %6 = vector.extract_strided_slice %5 {offsets = [0, 0, 0], sizes = [16, 16, 12], strides = [1, 1, 1]} : vector<18x16x12xf32> to vector<16x16x12xf32>
    %7 = vector.extract_strided_slice %5 {offsets = [1, 0, 0], sizes = [16, 16, 12], strides = [1, 1, 1]} : vector<18x16x12xf32> to vector<16x16x12xf32>
    %8 = vector.extract_strided_slice %5 {offsets = [2, 0, 0], sizes = [16, 16, 12], strides = [1, 1, 1]} : vector<18x16x12xf32> to vector<16x16x12xf32>
    %9 = tpu.concatenate %6, %7, %8 in 2 : vector<16x16x12xf32>, vector<16x16x12xf32>, vector<16x16x12xf32> -> vector<16x16x36xf32>
    %10 = vector.shape_cast %9 : vector<16x16x36xf32> to vector<256x36xf32>
    %c0_3 = arith.constant 0 : index
    %c0_4 = arith.constant 0 : index
    %11 = vector.load %arg3[%c0_3, %c0_4] : memref<36x4xf32, #tpu.memory_space<vmem>>, vector<36x4xf32>
    %cst = arith.constant dense<0.000000e+00> : vector<256x4xf32>
    %12 = tpu.matmul %10, %11, %cst {dimension_numbers = #tpu.dot_dimension_numbers<[1], [0], [0], [1], [0, 0, 1, 1], [], []>} : vector<256x36xf32>, vector<36x4xf32>, vector<256x4xf32> -> vector<256x4xf32>
    %c0_5 = arith.constant 0 : index
    %c0_6 = arith.constant 0 : index
    %13 = vector.load %arg4[%c0_5, %c0_6] : memref<1x4xf32, #tpu.memory_space<vmem>>, vector<1x4xf32>
    %14 = vector.broadcast %13 : vector<1x4xf32> to vector<256x4xf32>
    %15 = arith.addf %12, %14 : vector<256x4xf32>
    %cst_7 = arith.constant 0.000000e+00 : f32
    %16 = vector.broadcast %cst_7 : f32 to vector<256x4xf32>
    %17 = arith.cmpf oge, %15, %16 : vector<256x4xf32>
    %cst_8 = arith.constant 1.000000e-01 : f32
    %18 = vector.broadcast %cst_8 : f32 to vector<256x4xf32>
    %19 = arith.mulf %18, %15 : vector<256x4xf32>
    %20 = arith.select %17, %15, %19 : vector<256x4xi1>, vector<256x4xf32>
    %21 = vector.extract_strided_slice %1 {offsets = [1, 1, 0], sizes = [16, 16, 4], strides = [1, 1, 1]} : vector<18x18x4xf32> to vector<16x16x4xf32>
    %22 = vector.shape_cast %21 : vector<16x16x4xf32> to vector<256x4xf32>
    %23 = arith.addf %20, %22 : vector<256x4xf32>
    %c0_9 = arith.constant 0 : index
    %c0_10 = arith.constant 0 : index
    %c0_11 = arith.constant 0 : index
    %24 = vector.load %arg5[%c0_9, %c0_10, %c0_11] : memref<1x256x4xf32, #tpu.memory_space<vmem>>, vector<1x256x4xf32>
    %25 = vector.shape_cast %24 : vector<1x256x4xf32> to vector<256x4xf32>
    %26 = vector.shape_cast %23 : vector<256x4xf32> to vector<1x256x4xf32>
    tpu.vector_store %arg5[%c0_9, %c0_10, %c0_11], %26 {strides = array<i32>} : memref<1x256x4xf32, #tpu.memory_space<vmem>>, vector<1x256x4xf32>,
    return
  }
  func.func @transform_0(%arg0: i32, %arg1: i32) -> (i32, i32, i32, i32) {
    %c0_i32 = arith.constant 0 : i32
    %c0_i32_0 = arith.constant 0 : i32
    %c0_i32_1 = arith.constant 0 : i32
    %c0_i32_2 = arith.constant 0 : i32
    return %arg0, %c0_i32, %c0_i32_0, %c0_i32_1 : i32, i32, i32, i32
  }
  func.func @transform_1(%arg0: i32, %arg1: i32) -> (i32, i32) {
    %c0_i32 = arith.constant 0 : i32
    %c0_i32_0 = arith.constant 0 : i32
    %c0_i32_1 = arith.constant 0 : i32
    return %c0_i32, %c0_i32_0 : i32, i32
  }
  func.func @transform_2(%arg0: i32, %arg1: i32) -> (i32, i32) {
    %c0_i32 = arith.constant 0 : i32
    %c0_i32_0 = arith.constant 0 : i32
    %c0_i32_1 = arith.constant 0 : i32
    return %c0_i32, %c0_i32_0 : i32, i32
  }
  func.func @transform_3(%arg0: i32, %arg1: i32) -> (i32, i32, i32) {
    %c0_i32 = arith.constant 0 : i32
    %c0_i32_0 = arith.constant 0 : i32
    return %arg0, %arg1, %c0_i32 : i32, i32, i32
  }
}

</mosaic_0001>

<llo_original>
// kernel: tpu_custom_call.1
$region0: #{tpu_custom_call.1}
  #allocation0 [shape = 'u32[]', space=smem, size = 0x4, offset = 0x4, fixed_abs, tag = 'smem constant byte address 0x4 - core index']
  #allocation1 [shape = 'u32[144,128]{1,0:T(1,128)}', space=vmem, size = 0x12000, scoped, tag = 'internal scratch']
  %s0 = inlined_call_operand.hbm [shape: f32[2,18,18,4], index: 0, kind: input, shape index: {}]
  %s1 = inlined_call_operand.hbm [shape: f32[36,4], index: 1, kind: input, shape index: {}]
  %s2 = inlined_call_operand.hbm [shape: f32[1,4], index: 2, kind: input, shape index: {}]
  %s3 = inlined_call_operand.hbm [shape: f32[2,256,4], index: 3, kind: output, shape index: {}]
  %s4 = sld [smem:[#allocation0]]
  $region57: #{tpu_custom_call.1} parent=0
    _
  %s6 = ssub.s32 1, %s4
  %s7 = scalar_select 0, %s6, %s4
  $region1: #{tpu_custom_call.1} parent=0
    #allocation2 [shape = 'u8[442368]{0}', space=vmem, size = 0x6c000, scoped, tag = 'input window, operand 0']
    #allocation3 [shape = 's32[2]{0}', space=sflag, size = 0x8, scoped, tag = 'scoped memory for tpu_custom_call.1']
    #allocation4 [shape = 's32[2]{0}', space=sflag, size = 0x8, scoped, tag = 'scoped memory for tpu_custom_call.1']
    #allocation5 [shape = 'u8[20480]{0}', space=vmem, size = 0x5000, scoped, tag = 'input window, operand 1, single buffered']
    #allocation6 [shape = 's32[1]{0}', space=sflag, size = 0x4, scoped, tag = 'scoped memory for tpu_custom_call.1']
    #allocation7 [shape = 'u8[512]{0}', space=vmem, size = 0x400, scoped, tag = 'input window, operand 2, single buffered']
    #allocation8 [shape = 'u8[262144]{0}', space=vmem, size = 0x40000, scoped, tag = 'output window, operand 0']
    %8 = vsyncpa [#allocation3], 0
    %s9 = scalar_lea.sflag [#allocation3], 1
    %10 = vsyncpa %s9, 0
    %11 = vsyncpa [#allocation6], 0
    %12 = vsyncpa [#allocation4], 0
    %s13 = scalar_lea.sflag [#allocation4], 1
    %14 = vsyncpa %s13, 0
    loop: start=0, step=1, limit=4
    $region2: #{tpu_custom_call.1} parent=1 // loop_pre_header
      _
    $region3: #{tpu_custom_call.1} parent=1 // loop_header
      %s16 = sphi 0, %s20
      %p17 = scmp.ge.s32.totalorder %s16, 4
      %s23 = sphi 0, %s35
      %s24 = sphi 0, %s31
      %s25 = sphi 0, %s23
      %s26 = sphi 0, %s24
      %s27 = sphi 0, %s25
      %s28 = sphi 0, %s26
      %s38 = sphi 0, %s40
      %s41 = sphi 0, %s38
      %s42 = sphi 0, %s41
      %s58 = sphi 0, %s42
      %s62 = sphi 0, %s62
      %s64 = sphi 0, %s62
      %s65 = sphi 0, %s64
      %s79 = sphi 0, %s65
      %s83 = sphi 0, %s83
      %s85 = sphi 0, %s83
      %s86 = sphi 0, %s85
      %s100 = sphi 0, %s86
      %s108 = sphi 0, %s110
      %s111 = sphi 0, %s108
      %s112 = sphi 0, %s111
      %s128 = sphi 0, %s112
    $region4: #{tpu_custom_call.1} parent=1 // loop_header_branch
      %19 = sbr.rel (%p17) target = $region8
    $region5: #{tpu_custom_call.1} parent=1 // loop_body
      %s21 = ssub.s32 %s16, 1
      %s22 = ssub.s32 %s16, 2
      %s29 = sadd.s32 1, %s24
      %p30 = scmp.ge.s32.totalorder %s29, 1
      %s31 = scalar_select %p30, 0, %s29
      %s32 = sadd.s32 1, %s23
      %s33 = scalar_select %p30, %s32, %s23
      %p34 = scmp.ge.s32.totalorder %s33, 2
      %s35 = scalar_select %p34, 0, %s33
      %s36 = ssub.s32 %s23, %s35
      %p37 = scmp.eq.s32.totalorder %s36, 0
      %s39 = sadd.s32 %s38, 1
      %s40 = scalar_select %p37, %s38, %s39
      %p43 = pneg %p37
      %p44 = scmp.eq.s32.totalorder %s16, 1
      %p45 = por %p43, %p44
      %p46 = scmp.ne.s32.totalorder %s38, %s41
      %p47 = scmp.eq.s32.totalorder %s16, 0
      %p48 = por %p46, %p47
      %p49 = scmp.ne.s32.totalorder %s38, %s41
      %p50 = scmp.eq.s32.totalorder %s21, 1
      %p51 = por %p49, %p50
      %p52 = scmp.ne.s32.totalorder %s41, %s42
      %p53 = scmp.eq.s32.totalorder %s21, 0
      %p54 = por %p52, %p53
      %p55 = scmp.ne.s32.totalorder %s41, %s42
      %p56 = scmp.eq.s32.totalorder %s22, 1
      %p57 = por %p55, %p56
      %p59 = scmp.ne.s32.totalorder %s42, %s58
      %p60 = scmp.eq.s32.totalorder %s22, 0
      %p61 = por %p59, %p60
      %s63 = sadd.s32 %s62, 1
      %p66 = scmp.eq.s32.totalorder %s16, 1
      %p67 = scmp.ne.s32.totalorder %s62, %s64
      %p68 = scmp.eq.s32.totalorder %s16, 0
      %p69 = por %p67, %p68
      %p70 = scmp.ne.s32.totalorder %s62, %s64
      %p71 = scmp.eq.s32.totalorder %s21, 1
      %p72 = por %p70, %p71
      %p73 = scmp.ne.s32.totalorder %s64, %s65
      %p74 = scmp.eq.s32.totalorder %s21, 0
      %p75 = por %p73, %p74
      %p76 = scmp.ne.s32.totalorder %s64, %s65
      %p77 = scmp.eq.s32.totalorder %s22, 1
      %p78 = por %p76, %p77
      %p80 = scmp.ne.s32.totalorder %s65, %s79
      %p81 = scmp.eq.s32.totalorder %s22, 0
      %p82 = por %p80, %p81
      %s84 = sadd.s32 %s83, 1
      %p87 = scmp.eq.s32.totalorder %s16, 1
      %p88 = scmp.ne.s32.totalorder %s83, %s85
      %p89 = scmp.eq.s32.totalorder %s16, 0
      %p90 = por %p88, %p89
      %p91 = scmp.ne.s32.totalorder %s83, %s85
      %p92 = scmp.eq.s32.totalorder %s21, 1
      %p93 = por %p91, %p92
      %p94 = scmp.ne.s32.totalorder %s85, %s86
      %p95 = scmp.eq.s32.totalorder %s21, 0
      %p96 = por %p94, %p95
      %p97 = scmp.ne.s32.totalorder %s85, %s86
      %p98 = scmp.eq.s32.totalorder %s22, 1
      %p99 = por %p97, %p98
      %p101 = scmp.ne.s32.totalorder %s86, %s100
      %p102 = scmp.eq.s32.totalorder %s22, 0
      %p103 = por %p101, %p102
      %s104 = ssub.s32 %s23, %s35
      %s105 = ssub.s32 %s24, %s31
      %s106 = sor.u32 %s104, %s105
      %p107 = scmp.eq.s32.totalorder %s106, 0
      %s109 = sadd.s32 %s108, 1
      %s110 = scalar_select %p107, %s108, %s109
      %p113 = pneg %p107
      %p114 = scmp.eq.s32.totalorder %s16, 1
      %p115 = por %p113, %p114
      %p116 = scmp.ne.s32.totalorder %s108, %s111
      %p117 = scmp.eq.s32.totalorder %s16, 0
      %p118 = por %p116, %p117
      %p119 = scmp.ne.s32.totalorder %s108, %s111
      %p120 = scmp.eq.s32.totalorder %s21, 1
      %p121 = por %p119, %p120
      %p122 = scmp.ne.s32.totalorder %s111, %s112
      %p123 = scmp.eq.s32.totalorder %s21, 0
      %p124 = por %p122, %p123
      %p125 = scmp.ne.s32.totalorder %s111, %s112
      %p126 = scmp.eq.s32.totalorder %s22, 1
      %p127 = por %p125, %p126
      %p129 = scmp.ne.s32.totalorder %s112, %s128
      %p130 = scmp.eq.s32.totalorder %s22, 0
      %p131 = por %p129, %p130
      %p132 = scmp.le.s32.totalorder 1, %s16
      %p133 = scmp.lt.s32.totalorder %s16, 3
      %p134 = pnand %p132, %p133
      %p135 = pneg %p134
      // Predicated region
      $region9: #{tpu_custom_call.1} parent=5 // pred_check
        _
      $region10: #{tpu_custom_call.1} parent=5 // pred_check_branch
        %137 = sbr.rel (%p134) target = $region12
      $region11: #{tpu_custom_call.1} parent=5 // pred_region
        %s138 = ssub.s32 %s16, 1
        // Predicated region
        $region13: #{tpu_custom_call.1} parent=11 // pred_check
          %p139 = pneg %p75
        $region14: #{tpu_custom_call.1} parent=11 // pred_check_branch
          %141 = sbr.rel (%p139) target = $region16
        $region15: #{tpu_custom_call.1} parent=11 // pred_region
          %s143 = ssub.s32 640, 640
          %144 = vsyncadd [#allocation6], %s143
          %s145 = sshll.u32 [#allocation5], 4
          %s146 = int_to_ptr.vmem [resolvable:$true] %s145
          %151 = dma.hbm_to_vmem [thread:$0]  %s1, 640, %s146, [#allocation6], 128, 128, 8
        $region16: #{tpu_custom_call.1} parent=11 // pred_fallthru
          _
        // Predicated region
        $region17: #{tpu_custom_call.1} parent=11 // pred_check
          %p152 = pneg %p96
        $region18: #{tpu_custom_call.1} parent=11 // pred_check_branch
          %154 = sbr.rel (%p152) target = $region20
        $region19: #{tpu_custom_call.1} parent=11 // pred_region
          %s156 = ssub.s32 16, 16
          %157 = vsyncadd [#allocation6], %s156
          %s159 = sshll.u32 [#allocation7], 4
          %s160 = int_to_ptr.vmem [resolvable:$true] %s159
          %162 = dma.hbm_to_vmem [thread:$0]  %s2, 16, %s160, [#allocation6]
        $region20: #{tpu_custom_call.1} parent=11 // pred_fallthru
          _
      $region12: #{tpu_custom_call.1} parent=5 // pred_fallthru
        _
      %p163 = scmp.lt.s32.totalorder %s16, 2
      // Predicated region
      $region21: #{tpu_custom_call.1} parent=5 // pred_check
        %p164 = pneg %p163
      $region22: #{tpu_custom_call.1} parent=5 // pred_check_branch
        %166 = sbr.rel (%p164) target = $region24
      $region23: #{tpu_custom_call.1} parent=5 // pred_region
        // Predicated region
        $region25: #{tpu_custom_call.1} parent=23 // pred_check
          %p167 = pneg %p48
        $region26: #{tpu_custom_call.1} parent=23 // pred_check_branch
          %169 = sbr.rel (%p167) target = $region28
        $region27: #{tpu_custom_call.1} parent=23 // pred_region
          %s170 = sand.u32 %s38, 1
          %s171 = scalar_lea.sflag [#allocation3], %s170
          %s172 = sand.u32 %s38, 1
          %s173 = smul.addr %s172, 432
          %s174 = scalar_lea.vmem [#allocation2], %s173
          %s176 = ssub.s32 6912, 6912
          %177 = vsyncadd %s171, %s176
          %s178 = smul.addr %s23, 54
          %s179 = smul.addr %s178, 128
          %s180 = scalar_lea.hbm %s0, %s179
          %s181 = sshll.u32 %s174, 4
          %s182 = int_to_ptr.vmem [resolvable:$true] %s181
          %187 = dma.hbm_to_vmem [thread:$0]  %s180, 6912, %s182, %s171, 128, 128, 8
        $region28: #{tpu_custom_call.1} parent=23 // pred_fallthru
          _
      $region24: #{tpu_custom_call.1} parent=5 // pred_fallthru
        _
      %p188 = scmp.le.s32.totalorder 1, %s16
      %p189 = scmp.lt.s32.totalorder %s16, 3
      %p190 = pnand %p188, %p189
      %p191 = pneg %p190
      // Predicated region
      $region29: #{tpu_custom_call.1} parent=5 // pred_check
        _
      $region30: #{tpu_custom_call.1} parent=5 // pred_check_branch
        %193 = sbr.rel (%p190) target = $region32
      $region31: #{tpu_custom_call.1} parent=5 // pred_region
        %s194 = ssub.s32 %s16, 1
        %s195 = sand.u32 %s41, 1
        %s196 = scalar_lea.sflag [#allocation3], %s195
        %s197 = sand.u32 %s41, 1
        %s198 = smul.addr %s197, 432
        %s199 = scalar_lea.vmem [#allocation2], %s198
        // Predicated region
        $region33: #{tpu_custom_call.1} parent=31 // pred_check
          %p200 = pneg %p54
        $region34: #{tpu_custom_call.1} parent=31 // pred_check_branch
          %202 = sbr.rel (%p200) target = $region36
        $region35: #{tpu_custom_call.1} parent=31 // pred_region
          %203 = dma.done %s196, 6912
        $region36: #{tpu_custom_call.1} parent=31 // pred_fallthru
          _
        // Predicated region
        $region37: #{tpu_custom_call.1} parent=31 // pred_check
          %p204 = pneg %p75
        $region38: #{tpu_custom_call.1} parent=31 // pred_check_branch
          %206 = sbr.rel (%p204) target = $region40
        $region39: #{tpu_custom_call.1} parent=31 // pred_region
          %207 = dma.done [#allocation6], 640
        $region40: #{tpu_custom_call.1} parent=31 // pred_fallthru
          _
        // Predicated region
        $region41: #{tpu_custom_call.1} parent=31 // pred_check
          %p208 = pneg %p96
        $region42: #{tpu_custom_call.1} parent=31 // pred_check_branch
          %210 = sbr.rel (%p208) target = $region44
        $region43: #{tpu_custom_call.1} parent=31 // pred_region
          %211 = dma.done [#allocation6], 16
        $region44: #{tpu_custom_call.1} parent=31 // pred_fallthru
          _
        %s212 = sand.u32 %s41, 1
        %s213 = scalar_lea.sflag [#allocation3], %s212
        %s214 = sand.u32 %s41, 1
        %s215 = smul.addr %s214, 432
        %s216 = scalar_lea.vmem [#allocation2], %s215
        %p217 = pneg %p54
        %p218 = pneg %p51
        %p219 = pneg %p75
        %p220 = pneg %p72
        %p221 = pneg %p96
        %p222 = pneg %p93
        %p223 = pneg %p124
        %p224 = pneg %p121
        %s225 = sand.u32 %s111, 1
        %s226 = scalar_lea.sflag [#allocation4], %s225
        %s227 = sand.u32 %s111, 1
        %s228 = smul.addr %s227, 256
        %s229 = scalar_lea.vmem [#allocation8], %s228
        %s230 = smul.u32 32, %s26
        %v231 = vld [vmem:[%s199] sm:$0xff]
        %v232 = vld [vmem:[%s199 + $0x8] sm:$0xff]
        %v233 = vld [vmem:[%s199 + $0x10] sm:$0x3]
        %v234 = vld [vmem:[%s199 + $0x18] sm:$0xff]
        %v235 = vld [vmem:[%s199 + $0x20] sm:$0xff]
        %v236 = vld [vmem:[%s199 + $0x28] sm:$0x3]
        %v237 = vld [vmem:[%s199 + $0x30] sm:$0xff]
        %v238 = vld [vmem:[%s199 + $0x38] sm:$0xff]
        %v239 = vld [vmem:[%s199 + $0x40] sm:$0x3]
        %v240 = vld [vmem:[%s199 + $0x48] sm:$0xff]
        %v241 = vld [vmem:[%s199 + $0x50] sm:$0xff]
        %v242 = vld [vmem:[%s199 + $0x58] sm:$0x3]
        %v243 = vld [vmem:[%s199 + $0x60] sm:$0xff]
        %v244 = vld [vmem:[%s199 + $0x68] sm:$0xff]
        %v245 = vld [vmem:[%s199 + $0x70] sm:$0x3]
        %v246 = vld [vmem:[%s199 + $0x78] sm:$0xff]
        %v247 = vld [vmem:[%s199 + $0x80] sm:$0xff]
        %v248 = vld [vmem:[%s199 + $0x88] sm:$0x3]
        %v249 = vld [vmem:[%s199 + $0x90] sm:$0xff]
        %v250 = vld [vmem:[%s199 + $0x98] sm:$0xff]
        %v251 = vld [vmem:[%s199 + $0xa0] sm:$0x3]
        %v252 = vld [vmem:[%s199 + $0xa8] sm:$0xff]
        %v253 = vld [vmem:[%s199 + $0xb0] sm:$0xff]
        %v254 = vld [vmem:[%s199 + $0xb8] sm:$0x3]
        %v255 = vld [vmem:[%s199 + $0xc0] sm:$0xff]
        %v256 = vld [vmem:[%s199 + $0xc8] sm:$0xff]
        %v257 = vld [vmem:[%s199 + $0xd0] sm:$0x3]
        %v258 = vld [vmem:[%s199 + $0xd8] sm:$0xff]
        %v259 = vld [vmem:[%s199 + $0xe0] sm:$0xff]
        %v260 = vld [vmem:[%s199 + $0xe8] sm:$0x3]
        %v261 = vld [vmem:[%s199 + $0xf0] sm:$0xff]
        %v262 = vld [vmem:[%s199 + $0xf8] sm:$0xff]
        %v263 = vld [vmem:[%s199 + $0x100] sm:$0x3]
        %v264 = vld [vmem:[%s199 + $0x108] sm:$0xff]
        %v265 = vld [vmem:[%s199 + $0x110] sm:$0xff]
        %v266 = vld [vmem:[%s199 + $0x118] sm:$0x3]
        %v267 = vld [vmem:[%s199 + $0x120] sm:$0xff]
        %v268 = vld [vmem:[%s199 + $0x128] sm:$0xff]
        %v269 = vld [vmem:[%s199 + $0x130] sm:$0x3]
        %v270 = vld [vmem:[%s199 + $0x138] sm:$0xff]
        %v271 = vld [vmem:[%s199 + $0x140] sm:$0xff]
        %v272 = vld [vmem:[%s199 + $0x148] sm:$0x3]
        %v273 = vld [vmem:[%s199 + $0x150] sm:$0xff]
        %v274 = vld [vmem:[%s199 + $0x158] sm:$0xff]
        %v275 = vld [vmem:[%s199 + $0x160] sm:$0x3]
        %v276 = vld [vmem:[%s199 + $0x168] sm:$0xff]
        %v277 = vld [vmem:[%s199 + $0x170] sm:$0xff]
        %v278 = vld [vmem:[%s199 + $0x178] sm:$0x3]
        %v279 = vld [vmem:[%s199 + $0x180] sm:$0xff]
        %v280 = vld [vmem:[%s199 + $0x188] sm:$0xff]
        %v281 = vld [vmem:[%s199 + $0x190] sm:$0x3]
        %v282 = vld [vmem:[%s199 + $0x198] sm:$0xff]
        %v283 = vld [vmem:[%s199 + $0x1a0] sm:$0xff]
        %v284 = vld [vmem:[%s199 + $0x1a8] sm:$0x3]
        %vm339 = vcmask 1046528
        %v340 = vrot.slane %v231, 1
        %v341 = vrot.slane %v232, 1
        %v342 = vsel %vm339, %v340, %v341
        %v343 = vrot.slane %v233, 1
        %v344 = vsel %vm339, %v341, %v343
        %v345 = vrot.slane %v234, 1
        %v346 = vrot.slane %v235, 1
        %v347 = vsel %vm339, %v345, %v346
        %v348 = vrot.slane %v236, 1
        %v349 = vsel %vm339, %v346, %v348
        %v350 = vrot.slane %v237, 1
        %v351 = vrot.slane %v238, 1
        %v352 = vsel %vm339, %v350, %v351
        %v353 = vrot.slane %v239, 1
        %v354 = vsel %vm339, %v351, %v353
        %v355 = vrot.slane %v240, 1
        %v356 = vrot.slane %v241, 1
        %v357 = vsel %vm339, %v355, %v356
        %v358 = vrot.slane %v242, 1
        %v359 = vsel %vm339, %v356, %v358
        %v360 = vrot.slane %v243, 1
        %v361 = vrot.slane %v244, 1
        %v362 = vsel %vm339, %v360, %v361
        %v363 = vrot.slane %v245, 1
        %v364 = vsel %vm339, %v361, %v363
        %v365 = vrot.slane %v246, 1
        %v366 = vrot.slane %v247, 1
        %v367 = vsel %vm339, %v365, %v366
        %v368 = vrot.slane %v248, 1
        %v369 = vsel %vm339, %v366, %v368
        %v370 = vrot.slane %v249, 1
        %v371 = vrot.slane %v250, 1
        %v372 = vsel %vm339, %v370, %v371
        %v373 = vrot.slane %v251, 1
        %v374 = vsel %vm339, %v371, %v373
        %v375 = vrot.slane %v252, 1
        %v376 = vrot.slane %v253, 1
        %v377 = vsel %vm339, %v375, %v376
        %v378 = vrot.slane %v254, 1
        %v379 = vsel %vm339, %v376, %v378
        %v380 = vrot.slane %v255, 1
        %v381 = vrot.slane %v256, 1
        %v382 = vsel %vm339, %v380, %v381
        %v383 = vrot.slane %v257, 1
        %v384 = vsel %vm339, %v381, %v383
        %v385 = vrot.slane %v258, 1
        %v386 = vrot.slane %v259, 1
        %v387 = vsel %vm339, %v385, %v386
        %v388 = vrot.slane %v260, 1
        %v389 = vsel %vm339, %v386, %v388
        %v390 = vrot.slane %v261, 1
        %v391 = vrot.slane %v262, 1
        %v392 = vsel %vm339, %v390, %v391
        %v393 = vrot.slane %v263, 1
        %v394 = vsel %vm339, %v391, %v393
        %v395 = vrot.slane %v264, 1
        %v396 = vrot.slane %v265, 1
        %v397 = vsel %vm339, %v395, %v396
        %v398 = vrot.slane %v266, 1
        %v399 = vsel %vm339, %v396, %v398
        %v400 = vrot.slane %v267, 1
        %v401 = vrot.slane %v268, 1
        %v402 = vsel %vm339, %v400, %v401
        %v403 = vrot.slane %v269, 1
        %v404 = vsel %vm339, %v401, %v403
        %v405 = vrot.slane %v270, 1
        %v406 = vrot.slane %v271, 1
        %v407 = vsel %vm339, %v405, %v406
        %v408 = vrot.slane %v272, 1
        %v409 = vsel %vm339, %v406, %v408
        %v410 = vrot.slane %v273, 1
        %v411 = vrot.slane %v274, 1
        %v412 = vsel %vm339, %v410, %v411
        %v413 = vrot.slane %v275, 1
        %v414 = vsel %vm339, %v411, %v413
        %v415 = vrot.slane %v276, 1
        %v416 = vrot.slane %v277, 1
        %v417 = vsel %vm339, %v415, %v416
        %v418 = vrot.slane %v278, 1
        %v419 = vsel %vm339, %v416, %v418
        %v420 = vrot.slane %v279, 1
        %v421 = vrot.slane %v280, 1
        %v422 = vsel %vm339, %v420, %v421
        %v423 = vrot.slane %v281, 1
        %v424 = vsel %vm339, %v421, %v423
        %v425 = vrot.slane %v282, 1
        %v426 = vrot.slane %v283, 1
        %v427 = vsel %vm339, %v425, %v426
        %v428 = vrot.slane %v284, 1
        %v429 = vsel %vm339, %v426, %v428
        %430 = vrot.lane.b32.xlu0 %v342, 4
        %v431 = vpop.permute.xlu0 %430
        %432 = vrot.lane.b32.xlu0 %v344, 4
        %v433 = vpop.permute.xlu0 %432
        %434 = vrot.lane.b32.xlu0 %v347, 4
        %v435 = vpop.permute.xlu0 %434
        %436 = vrot.lane.b32.xlu0 %v349, 4
        %v437 = vpop.permute.xlu0 %436
        %438 = vrot.lane.b32.xlu0 %v352, 4
        %v439 = vpop.permute.xlu0 %438
        %440 = vrot.lane.b32.xlu0 %v354, 4
        %v441 = vpop.permute.xlu0 %440
        %442 = vrot.lane.b32.xlu0 %v357, 4
        %v443 = vpop.permute.xlu0 %442
        %444 = vrot.lane.b32.xlu0 %v359, 4
        %v445 = vpop.permute.xlu0 %444
        %446 = vrot.lane.b32.xlu0 %v362, 4
        %v447 = vpop.permute.xlu0 %446
        %448 = vrot.lane.b32.xlu0 %v364, 4
        %v449 = vpop.permute.xlu0 %448
        %450 = vrot.lane.b32.xlu0 %v367, 4
        %v451 = vpop.permute.xlu0 %450
        %452 = vrot.lane.b32.xlu0 %v369, 4
        %v453 = vpop.permute.xlu0 %452
        %454 = vrot.lane.b32.xlu0 %v372, 4
        %v455 = vpop.permute.xlu0 %454
        %456 = vrot.lane.b32.xlu0 %v374, 4
        %v457 = vpop.permute.xlu0 %456
        %458 = vrot.lane.b32.xlu0 %v377, 4
        %v459 = vpop.permute.xlu0 %458
        %460 = vrot.lane.b32.xlu0 %v379, 4
        %v461 = vpop.permute.xlu0 %460
        %462 = vrot.lane.b32.xlu0 %v382, 4
        %v463 = vpop.permute.xlu0 %462
        %464 = vrot.lane.b32.xlu0 %v384, 4
        %v465 = vpop.permute.xlu0 %464
        %466 = vrot.lane.b32.xlu0 %v387, 4
        %v467 = vpop.permute.xlu0 %466
        %468 = vrot.lane.b32.xlu0 %v389, 4
        %v469 = vpop.permute.xlu0 %468
        %470 = vrot.lane.b32.xlu0 %v392, 4
        %v471 = vpop.permute.xlu0 %470
        %472 = vrot.lane.b32.xlu0 %v394, 4
        %v473 = vpop.permute.xlu0 %472
        %474 = vrot.lane.b32.xlu0 %v397, 4
        %v475 = vpop.permute.xlu0 %474
        %476 = vrot.lane.b32.xlu0 %v399, 4
        %v477 = vpop.permute.xlu0 %476
        %478 = vrot.lane.b32.xlu0 %v402, 4
        %v479 = vpop.permute.xlu0 %478
        %480 = vrot.lane.b32.xlu0 %v404, 4
        %v481 = vpop.permute.xlu0 %480
        %482 = vrot.lane.b32.xlu0 %v407, 4
        %v483 = vpop.permute.xlu0 %482
        %484 = vrot.lane.b32.xlu0 %v409, 4
        %v485 = vpop.permute.xlu0 %484
        %486 = vrot.lane.b32.xlu0 %v412, 4
        %v487 = vpop.permute.xlu0 %486
        %488 = vrot.lane.b32.xlu0 %v414, 4
        %v489 = vpop.permute.xlu0 %488
        %490 = vrot.lane.b32.xlu0 %v417, 4
        %v491 = vpop.permute.xlu0 %490
        %492 = vrot.lane.b32.xlu0 %v419, 4
        %v493 = vpop.permute.xlu0 %492
        %494 = vrot.lane.b32.xlu0 %v422, 4
        %v495 = vpop.permute.xlu0 %494
        %496 = vrot.lane.b32.xlu0 %v424, 4
        %v497 = vpop.permute.xlu0 %496
        %498 = vrot.lane.b32.xlu0 %v427, 4
        %v499 = vpop.permute.xlu0 %498
        %500 = vrot.lane.b32.xlu0 %v429, 4
        %v501 = vpop.permute.xlu0 %500
        %vm538 = vcmask 1045504
        %v539 = vrot.slane %v231, 2
        %v540 = vrot.slane %v232, 2
        %v541 = vsel %vm538, %v539, %v540
        %v542 = vrot.slane %v233, 2
        %v543 = vsel %vm538, %v540, %v542
        %v544 = vrot.slane %v234, 2
        %v545 = vrot.slane %v235, 2
        %v546 = vsel %vm538, %v544, %v545
        %v547 = vrot.slane %v236, 2
        %v548 = vsel %vm538, %v545, %v547
        %v549 = vrot.slane %v237, 2
        %v550 = vrot.slane %v238, 2
        %v551 = vsel %vm538, %v549, %v550
        %v552 = vrot.slane %v239, 2
        %v553 = vsel %vm538, %v550, %v552
        %v554 = vrot.slane %v240, 2
        %v555 = vrot.slane %v241, 2
        %v556 = vsel %vm538, %v554, %v555
        %v557 = vrot.slane %v242, 2
        %v558 = vsel %vm538, %v555, %v557
        %v559 = vrot.slane %v243, 2
        %v560 = vrot.slane %v244, 2
        %v561 = vsel %vm538, %v559, %v560
        %v562 = vrot.slane %v245, 2
        %v563 = vsel %vm538, %v560, %v562
        %v564 = vrot.slane %v246, 2
        %v565 = vrot.slane %v247, 2
        %v566 = vsel %vm538, %v564, %v565
        %v567 = vrot.slane %v248, 2
        %v568 = vsel %vm538, %v565, %v567
        %v569 = vrot.slane %v249, 2
        %v570 = vrot.slane %v250, 2
        %v571 = vsel %vm538, %v569, %v570
        %v572 = vrot.slane %v251, 2
        %v573 = vsel %vm538, %v570, %v572
        %v574 = vrot.slane %v252, 2
        %v575 = vrot.slane %v253, 2
        %v576 = vsel %vm538, %v574, %v575
        %v577 = vrot.slane %v254, 2
        %v578 = vsel %vm538, %v575, %v577
        %v579 = vrot.slane %v255, 2
        %v580 = vrot.slane %v256, 2
        %v581 = vsel %vm538, %v579, %v580
        %v582 = vrot.slane %v257, 2
        %v583 = vsel %vm538, %v580, %v582
        %v584 = vrot.slane %v258, 2
        %v585 = vrot.slane %v259, 2
        %v586 = vsel %vm538, %v584, %v585
        %v587 = vrot.slane %v260, 2
        %v588 = vsel %vm538, %v585, %v587
        %v589 = vrot.slane %v261, 2
        %v590 = vrot.slane %v262, 2
        %v591 = vsel %vm538, %v589, %v590
        %v592 = vrot.slane %v263, 2
        %v593 = vsel %vm538, %v590, %v592
        %v594 = vrot.slane %v264, 2
        %v595 = vrot.slane %v265, 2
        %v596 = vsel %vm538, %v594, %v595
        %v597 = vrot.slane %v266, 2
        %v598 = vsel %vm538, %v595, %v597
        %v599 = vrot.slane %v267, 2
        %v600 = vrot.slane %v268, 2
        %v601 = vsel %vm538, %v599, %v600
        %v602 = vrot.slane %v269, 2
        %v603 = vsel %vm538, %v600, %v602
        %v604 = vrot.slane %v270, 2
        %v605 = vrot.slane %v271, 2
        %v606 = vsel %vm538, %v604, %v605
        %v607 = vrot.slane %v272, 2
        %v608 = vsel %vm538, %v605, %v607
        %v609 = vrot.slane %v273, 2
        %v610 = vrot.slane %v274, 2
        %v611 = vsel %vm538, %v609, %v610
        %v612 = vrot.slane %v275, 2
        %v613 = vsel %vm538, %v610, %v612
        %v614 = vrot.slane %v276, 2
        %v615 = vrot.slane %v277, 2
        %v616 = vsel %vm538, %v614, %v615
        %v617 = vrot.slane %v278, 2
        %v618 = vsel %vm538, %v615, %v617
        %v619 = vrot.slane %v279, 2
        %v620 = vrot.slane %v280, 2
        %v621 = vsel %vm538, %v619, %v620
        %v622 = vrot.slane %v281, 2
        %v623 = vsel %vm538, %v620, %v622
        %v624 = vrot.slane %v282, 2
        %v625 = vrot.slane %v283, 2
        %v626 = vsel %vm538, %v624, %v625
        %v627 = vrot.slane %v284, 2
        %v628 = vsel %vm538, %v625, %v627
        %629 = vrot.lane.b32.xlu0 %v541, 8
        %v630 = vpop.permute.xlu0 %629
        %631 = vrot.lane.b32.xlu0 %v543, 8
        %v632 = vpop.permute.xlu0 %631
        %633 = vrot.lane.b32.xlu0 %v546, 8
        %v634 = vpop.permute.xlu0 %633
        %635 = vrot.lane.b32.xlu0 %v548, 8
        %v636 = vpop.permute.xlu0 %635
        %637 = vrot.lane.b32.xlu0 %v551, 8
        %v638 = vpop.permute.xlu0 %637
        %639 = vrot.lane.b32.xlu0 %v553, 8
        %v640 = vpop.permute.xlu0 %639
        %641 = vrot.lane.b32.xlu0 %v556, 8
        %v642 = vpop.permute.xlu0 %641
        %643 = vrot.lane.b32.xlu0 %v558, 8
        %v644 = vpop.permute.xlu0 %643
        %645 = vrot.lane.b32.xlu0 %v561, 8
        %v646 = vpop.permute.xlu0 %645
        %647 = vrot.lane.b32.xlu0 %v563, 8
        %v648 = vpop.permute.xlu0 %647
        %649 = vrot.lane.b32.xlu0 %v566, 8
        %v650 = vpop.permute.xlu0 %649
        %651 = vrot.lane.b32.xlu0 %v568, 8
        %v652 = vpop.permute.xlu0 %651
        %653 = vrot.lane.b32.xlu0 %v571, 8
        %v654 = vpop.permute.xlu0 %653
        %655 = vrot.lane.b32.xlu0 %v573, 8
        %v656 = vpop.permute.xlu0 %655
        %657 = vrot.lane.b32.xlu0 %v576, 8
        %v658 = vpop.permute.xlu0 %657
        %659 = vrot.lane.b32.xlu0 %v578, 8
        %v660 = vpop.permute.xlu0 %659
        %661 = vrot.lane.b32.xlu0 %v581, 8
        %v662 = vpop.permute.xlu0 %661
        %663 = vrot.lane.b32.xlu0 %v583, 8
        %v664 = vpop.permute.xlu0 %663
        %665 = vrot.lane.b32.xlu0 %v586, 8
        %v666 = vpop.permute.xlu0 %665
        %667 = vrot.lane.b32.xlu0 %v588, 8
        %v668 = vpop.permute.xlu0 %667
        %669 = vrot.lane.b32.xlu0 %v591, 8
        %v670 = vpop.permute.xlu0 %669
        %671 = vrot.lane.b32.xlu0 %v593, 8
        %v672 = vpop.permute.xlu0 %671
        %673 = vrot.lane.b32.xlu0 %v596, 8
        %v674 = vpop.permute.xlu0 %673
        %675 = vrot.lane.b32.xlu0 %v598, 8
        %v676 = vpop.permute.xlu0 %675
        %677 = vrot.lane.b32.xlu0 %v601, 8
        %v678 = vpop.permute.xlu0 %677
        %679 = vrot.lane.b32.xlu0 %v603, 8
        %v680 = vpop.permute.xlu0 %679
        %681 = vrot.lane.b32.xlu0 %v606, 8
        %v682 = vpop.permute.xlu0 %681
        %683 = vrot.lane.b32.xlu0 %v608, 8
        %v684 = vpop.permute.xlu0 %683
        %685 = vrot.lane.b32.xlu0 %v611, 8
        %v686 = vpop.permute.xlu0 %685
        %687 = vrot.lane.b32.xlu0 %v613, 8
        %v688 = vpop.permute.xlu0 %687
        %689 = vrot.lane.b32.xlu0 %v616, 8
        %v690 = vpop.permute.xlu0 %689
        %691 = vrot.lane.b32.xlu0 %v618, 8
        %v692 = vpop.permute.xlu0 %691
        %693 = vrot.lane.b32.xlu0 %v621, 8
        %v694 = vpop.permute.xlu0 %693
        %695 = vrot.lane.b32.xlu0 %v623, 8
        %v696 = vpop.permute.xlu0 %695
        %697 = vrot.lane.b32.xlu0 %v626, 8
        %v698 = vpop.permute.xlu0 %697
        %699 = vrot.lane.b32.xlu0 %v628, 8
        %v700 = vpop.permute.xlu0 %699
        %vm737 = vcmask 31744
        %v738 = vsel %vm737, %v231, %v431
        %v739 = vsel %vm737, %v232, %v433
        %v740 = vsel %vm737, %v234, %v435
        %v741 = vsel %vm737, %v235, %v437
        %v742 = vsel %vm737, %v237, %v439
        %v743 = vsel %vm737, %v238, %v441
        %v744 = vsel %vm737, %v240, %v443
        %v745 = vsel %vm737, %v241, %v445
        %v746 = vsel %vm737, %v243, %v447
        %v747 = vsel %vm737, %v244, %v449
        %v748 = vsel %vm737, %v246, %v451
        %v749 = vsel %vm737, %v247, %v453
        %v750 = vsel %vm737, %v249, %v455
        %v751 = vsel %vm737, %v250, %v457
        %v752 = vsel %vm737, %v252, %v459
        %v753 = vsel %vm737, %v253, %v461
        %v754 = vsel %vm737, %v255, %v463
        %v755 = vsel %vm737, %v256, %v465
        %v756 = vsel %vm737, %v258, %v467
        %v757 = vsel %vm737, %v259, %v469
        %v758 = vsel %vm737, %v261, %v471
        %v759 = vsel %vm737, %v262, %v473
        %v760 = vsel %vm737, %v264, %v475
        %v761 = vsel %vm737, %v265, %v477
        %v762 = vsel %vm737, %v267, %v479
        %v763 = vsel %vm737, %v268, %v481
        %v764 = vsel %vm737, %v270, %v483
        %v765 = vsel %vm737, %v271, %v485
        %v766 = vsel %vm737, %v273, %v487
        %v767 = vsel %vm737, %v274, %v489
        %v768 = vsel %vm737, %v276, %v491
        %v769 = vsel %vm737, %v277, %v493
        %v770 = vsel %vm737, %v279, %v495
        %v771 = vsel %vm737, %v280, %v497
        %v772 = vsel %vm737, %v282, %v499
        %v773 = vsel %vm737, %v283, %v501
        %vm774 = vcmask 64512
        %v775 = vsel %vm774, %v738, %v630
        %v776 = vsel %vm774, %v739, %v632
        %v777 = vsel %vm774, %v740, %v634
        %v778 = vsel %vm774, %v741, %v636
        %v779 = vsel %vm774, %v742, %v638
        %v780 = vsel %vm774, %v743, %v640
        %v781 = vsel %vm774, %v744, %v642
        %v782 = vsel %vm774, %v745, %v644
        %v783 = vsel %vm774, %v746, %v646
        %v784 = vsel %vm774, %v747, %v648
        %v785 = vsel %vm774, %v748, %v650
        %v786 = vsel %vm774, %v749, %v652
        %v787 = vsel %vm774, %v750, %v654
        %v788 = vsel %vm774, %v751, %v656
        %v789 = vsel %vm774, %v752, %v658
        %v790 = vsel %vm774, %v753, %v660
        %v791 = vsel %vm774, %v754, %v662
        %v792 = vsel %vm774, %v755, %v664
        %v793 = vsel %vm774, %v756, %v666
        %v794 = vsel %vm774, %v757, %v668
        %v795 = vsel %vm774, %v758, %v670
        %v796 = vsel %vm774, %v759, %v672
        %v797 = vsel %vm774, %v760, %v674
        %v798 = vsel %vm774, %v761, %v676
        %v799 = vsel %vm774, %v762, %v678
        %v800 = vsel %vm774, %v763, %v680
        %v801 = vsel %vm774, %v764, %v682
        %v802 = vsel %vm774, %v765, %v684
        %v803 = vsel %vm774, %v766, %v686
        %v804 = vsel %vm774, %v767, %v688
        %v805 = vsel %vm774, %v768, %v690
        %v806 = vsel %vm774, %v769, %v692
        %v807 = vsel %vm774, %v770, %v694
        %v808 = vsel %vm774, %v771, %v696
        %v809 = vsel %vm774, %v772, %v698
        %v810 = vsel %vm774, %v773, %v700
        %843 = vrot.lane.b32.xlu0 %v777, 12
        %v844 = vpop.permute.xlu0 %843
        %845 = vrot.lane.b32.xlu0 %v778, 12
        %v846 = vpop.permute.xlu0 %845
        %847 = vrot.lane.b32.xlu0 %v779, 12
        %v848 = vpop.permute.xlu0 %847
        %849 = vrot.lane.b32.xlu0 %v780, 12
        %v850 = vpop.permute.xlu0 %849
        %851 = vrot.lane.b32.xlu0 %v781, 12
        %v852 = vpop.permute.xlu0 %851
        %853 = vrot.lane.b32.xlu0 %v782, 12
        %v854 = vpop.permute.xlu0 %853
        %855 = vrot.lane.b32.xlu0 %v783, 12
        %v856 = vpop.permute.xlu0 %855
        %857 = vrot.lane.b32.xlu0 %v784, 12
        %v858 = vpop.permute.xlu0 %857
        %859 = vrot.lane.b32.xlu0 %v785, 12
        %v860 = vpop.permute.xlu0 %859
        %861 = vrot.lane.b32.xlu0 %v786, 12
        %v862 = vpop.permute.xlu0 %861
        %863 = vrot.lane.b32.xlu0 %v787, 12
        %v864 = vpop.permute.xlu0 %863
        %865 = vrot.lane.b32.xlu0 %v788, 12
        %v866 = vpop.permute.xlu0 %865
        %867 = vrot.lane.b32.xlu0 %v789, 12
        %v868 = vpop.permute.xlu0 %867
        %869 = vrot.lane.b32.xlu0 %v790, 12
        %v870 = vpop.permute.xlu0 %869
        %871 = vrot.lane.b32.xlu0 %v791, 12
        %v872 = vpop.permute.xlu0 %871
        %873 = vrot.lane.b32.xlu0 %v792, 12
        %v874 = vpop.permute.xlu0 %873
        %875 = vrot.lane.b32.xlu0 %v793, 12
        %v876 = vpop.permute.xlu0 %875
        %877 = vrot.lane.b32.xlu0 %v794, 12
        %v878 = vpop.permute.xlu0 %877
        %879 = vrot.lane.b32.xlu0 %v795, 12
        %v880 = vpop.permute.xlu0 %879
        %881 = vrot.lane.b32.xlu0 %v796, 12
        %v882 = vpop.permute.xlu0 %881
        %883 = vrot.lane.b32.xlu0 %v797, 12
        %v884 = vpop.permute.xlu0 %883
        %885 = vrot.lane.b32.xlu0 %v798, 12
        %v886 = vpop.permute.xlu0 %885
        %887 = vrot.lane.b32.xlu0 %v799, 12
        %v888 = vpop.permute.xlu0 %887
        %889 = vrot.lane.b32.xlu0 %v800, 12
        %v890 = vpop.permute.xlu0 %889
        %891 = vrot.lane.b32.xlu0 %v801, 12
        %v892 = vpop.permute.xlu0 %891
        %893 = vrot.lane.b32.xlu0 %v802, 12
        %v894 = vpop.permute.xlu0 %893
        %895 = vrot.lane.b32.xlu0 %v803, 12
        %v896 = vpop.permute.xlu0 %895
        %897 = vrot.lane.b32.xlu0 %v804, 12
        %v898 = vpop.permute.xlu0 %897
        %899 = vrot.lane.b32.xlu0 %v805, 12
        %v900 = vpop.permute.xlu0 %899
        %901 = vrot.lane.b32.xlu0 %v806, 12
        %v902 = vpop.permute.xlu0 %901
        %903 = vrot.lane.b32.xlu0 %v807, 12
        %v904 = vpop.permute.xlu0 %903
        %905 = vrot.lane.b32.xlu0 %v808, 12
        %v906 = vpop.permute.xlu0 %905
        %941 = vrot.lane.b32.xlu0 %v779, 24
        %v942 = vpop.permute.xlu0 %941
        %943 = vrot.lane.b32.xlu0 %v780, 24
        %v944 = vpop.permute.xlu0 %943
        %945 = vrot.lane.b32.xlu0 %v781, 24
        %v946 = vpop.permute.xlu0 %945
        %947 = vrot.lane.b32.xlu0 %v782, 24
        %v948 = vpop.permute.xlu0 %947
        %949 = vrot.lane.b32.xlu0 %v783, 24
        %v950 = vpop.permute.xlu0 %949
        %951 = vrot.lane.b32.xlu0 %v784, 24
        %v952 = vpop.permute.xlu0 %951
        %953 = vrot.lane.b32.xlu0 %v785, 24
        %v954 = vpop.permute.xlu0 %953
        %955 = vrot.lane.b32.xlu0 %v786, 24
        %v956 = vpop.permute.xlu0 %955
        %957 = vrot.lane.b32.xlu0 %v787, 24
        %v958 = vpop.permute.xlu0 %957
        %959 = vrot.lane.b32.xlu0 %v788, 24
        %v960 = vpop.permute.xlu0 %959
        %961 = vrot.lane.b32.xlu0 %v789, 24
        %v962 = vpop.permute.xlu0 %961
        %963 = vrot.lane.b32.xlu0 %v790, 24
        %v964 = vpop.permute.xlu0 %963
        %965 = vrot.lane.b32.xlu0 %v791, 24
        %v966 = vpop.permute.xlu0 %965
        %967 = vrot.lane.b32.xlu0 %v792, 24
        %v968 = vpop.permute.xlu0 %967
        %969 = vrot.lane.b32.xlu0 %v793, 24
        %v970 = vpop.permute.xlu0 %969
        %971 = vrot.lane.b32.xlu0 %v794, 24
        %v972 = vpop.permute.xlu0 %971
        %973 = vrot.lane.b32.xlu0 %v795, 24
        %v974 = vpop.permute.xlu0 %973
        %975 = vrot.lane.b32.xlu0 %v796, 24
        %v976 = vpop.permute.xlu0 %975
        %977 = vrot.lane.b32.xlu0 %v797, 24
        %v978 = vpop.permute.xlu0 %977
        %979 = vrot.lane.b32.xlu0 %v798, 24
        %v980 = vpop.permute.xlu0 %979
        %981 = vrot.lane.b32.xlu0 %v799, 24
        %v982 = vpop.permute.xlu0 %981
        %983 = vrot.lane.b32.xlu0 %v800, 24
        %v984 = vpop.permute.xlu0 %983
        %985 = vrot.lane.b32.xlu0 %v801, 24
        %v986 = vpop.permute.xlu0 %985
        %987 = vrot.lane.b32.xlu0 %v802, 24
        %v988 = vpop.permute.xlu0 %987
        %989 = vrot.lane.b32.xlu0 %v803, 24
        %v990 = vpop.permute.xlu0 %989
        %991 = vrot.lane.b32.xlu0 %v804, 24
        %v992 = vpop.permute.xlu0 %991
        %993 = vrot.lane.b32.xlu0 %v805, 24
        %v994 = vpop.permute.xlu0 %993
        %995 = vrot.lane.b32.xlu0 %v806, 24
        %v996 = vpop.permute.xlu0 %995
        %997 = vrot.lane.b32.xlu0 %v807, 24
        %v998 = vpop.permute.xlu0 %997
        %999 = vrot.lane.b32.xlu0 %v808, 24
        %v1000 = vpop.permute.xlu0 %999
        %1001 = vrot.lane.b32.xlu0 %v809, 24
        %v1002 = vpop.permute.xlu0 %1001
        %1003 = vrot.lane.b32.xlu0 %v810, 24
        %v1004 = vpop.permute.xlu0 %1003
        %vm1037 = vcmask 97280
        %v1038 = vsel %vm1037, %v775, %v844
        %v1039 = vsel %vm1037, %v776, %v846
        %v1040 = vsel %vm1037, %v777, %v848
        %v1041 = vsel %vm1037, %v778, %v850
        %v1042 = vsel %vm1037, %v779, %v852
        %v1043 = vsel %vm1037, %v780, %v854
        %v1044 = vsel %vm1037, %v781, %v856
        %v1045 = vsel %vm1037, %v782, %v858
        %v1046 = vsel %vm1037, %v783, %v860
        %v1047 = vsel %vm1037, %v784, %v862
        %v1048 = vsel %vm1037, %v785, %v864
        %v1049 = vsel %vm1037, %v786, %v866
        %v1050 = vsel %vm1037, %v787, %v868
        %v1051 = vsel %vm1037, %v788, %v870
        %v1052 = vsel %vm1037, %v789, %v872
        %v1053 = vsel %vm1037, %v790, %v874
        %v1054 = vsel %vm1037, %v791, %v876
        %v1055 = vsel %vm1037, %v792, %v878
        %v1056 = vsel %vm1037, %v793, %v880
        %v1057 = vsel %vm1037, %v794, %v882
        %v1058 = vsel %vm1037, %v795, %v884
        %v1059 = vsel %vm1037, %v796, %v886
        %v1060 = vsel %vm1037, %v797, %v888
        %v1061 = vsel %vm1037, %v798, %v890
        %v1062 = vsel %vm1037, %v799, %v892
        %v1063 = vsel %vm1037, %v800, %v894
        %v1064 = vsel %vm1037, %v801, %v896
        %v1065 = vsel %vm1037, %v802, %v898
        %v1066 = vsel %vm1037, %v803, %v900
        %v1067 = vsel %vm1037, %v804, %v902
        %v1068 = vsel %vm1037, %v805, %v904
        %v1069 = vsel %vm1037, %v806, %v906
        %vm1070 = vcmask 195584
        %v1071 = vsel %vm1070, %v1038, %v942
        %v1072 = vsel %vm1070, %v1039, %v944
        %v1073 = vsel %vm1070, %v1040, %v946
        %v1074 = vsel %vm1070, %v1041, %v948
        %v1075 = vsel %vm1070, %v1042, %v950
        %v1076 = vsel %vm1070, %v1043, %v952
        %v1077 = vsel %vm1070, %v1044, %v954
        %v1078 = vsel %vm1070, %v1045, %v956
        %v1079 = vsel %vm1070, %v1046, %v958
        %v1080 = vsel %vm1070, %v1047, %v960
        %v1081 = vsel %vm1070, %v1048, %v962
        %v1082 = vsel %vm1070, %v1049, %v964
        %v1083 = vsel %vm1070, %v1050, %v966
        %v1084 = vsel %vm1070, %v1051, %v968
        %v1085 = vsel %vm1070, %v1052, %v970
        %v1086 = vsel %vm1070, %v1053, %v972
        %v1087 = vsel %vm1070, %v1054, %v974
        %v1088 = vsel %vm1070, %v1055, %v976
        %v1089 = vsel %vm1070, %v1056, %v978
        %v1090 = vsel %vm1070, %v1057, %v980
        %v1091 = vsel %vm1070, %v1058, %v982
        %v1092 = vsel %vm1070, %v1059, %v984
        %v1093 = vsel %vm1070, %v1060, %v986
        %v1094 = vsel %vm1070, %v1061, %v988
        %v1095 = vsel %vm1070, %v1062, %v990
        %v1096 = vsel %vm1070, %v1063, %v992
        %v1097 = vsel %vm1070, %v1064, %v994
        %v1098 = vsel %vm1070, %v1065, %v996
        %v1099 = vsel %vm1070, %v1066, %v998
        %v1100 = vsel %vm1070, %v1067, %v1000
        %v1101 = vsel %vm1070, %v1068, %v1002
        %v1102 = vsel %vm1070, %v1069, %v1004
        %v1103 = vld [vmem:[#allocation5] sm:$0xff]
        %v1104 = vld [vmem:[#allocation5 + $0x8] sm:$0xff]
        %v1105 = vld [vmem:[#allocation5 + $0x10] sm:$0xff]
        %v1106 = vld [vmem:[#allocation5 + $0x18] sm:$0xff]
        %v1107 = vld [vmem:[#allocation5 + $0x20] sm:$0xf]
        %v1108 = vld [vmem:[#allocation7] sm:$0x1]
        %v1110 = vlaneseq
        %v1111 = vshrl.u32 %v1110, 7
        %v1112 = vsub.s32 0, %v1111
        %v1113 = vrot.slane %v1108, %v1112
        %vm1115 = vcmask 293888
        %v1117 = vsel %vm1115, %v1071, 0
        %v1120 = vsel %vm1115, %v1072, 0
        %v1123 = vsel %vm1115, %v1073, 0
        %v1126 = vsel %vm1115, %v1074, 0
        %v1129 = vsel %vm1115, %v1075, 0
        %v1132 = vsel %vm1115, %v1076, 0
        %v1135 = vsel %vm1115, %v1077, 0
        %v1138 = vsel %vm1115, %v1078, 0
        %v1141 = vsel %vm1115, %v1079, 0
        %v1144 = vsel %vm1115, %v1080, 0
        %v1147 = vsel %vm1115, %v1081, 0
        %v1150 = vsel %vm1115, %v1082, 0
        %v1153 = vsel %vm1115, %v1083, 0
        %v1156 = vsel %vm1115, %v1084, 0
        %v1159 = vsel %vm1115, %v1085, 0
        %v1162 = vsel %vm1115, %v1086, 0
        %v1165 = vsel %vm1115, %v1087, 0
        %v1168 = vsel %vm1115, %v1088, 0
        %v1171 = vsel %vm1115, %v1089, 0
        %v1174 = vsel %vm1115, %v1090, 0
        %v1177 = vsel %vm1115, %v1091, 0
        %v1180 = vsel %vm1115, %v1092, 0
        %v1183 = vsel %vm1115, %v1093, 0
        %v1186 = vsel %vm1115, %v1094, 0
        %v1189 = vsel %vm1115, %v1095, 0
        %v1192 = vsel %vm1115, %v1096, 0
        %v1195 = vsel %vm1115, %v1097, 0
        %v1198 = vsel %vm1115, %v1098, 0
        %v1201 = vsel %vm1115, %v1099, 0
        %v1204 = vsel %vm1115, %v1100, 0
        %v1207 = vsel %vm1115, %v1101, 0
        %v1210 = vsel %vm1115, %v1102, 0
        %vm1212 = vcmask 1043456
        %v1214 = vsel %vm1212, %v1107, 0
        %1216 = vmatprep.subr.mxu0 0.0
        %1217 = vmatpush1.msra.mxu0 %v1103
        %1218 = vmatprep.subr.mxu0 0.0
        %1219 = vmatpush1.msra.mxu0 %v1104
        %1220 = vmatprep.subr.mxu0 0.0
        %1221 = vmatpush1.msra.mxu0 %v1105
        %1222 = vmatprep.subr.mxu0 0.0
        %1223 = vmatpush1.msra.mxu0 %v1106
        %1224 = vmatprep.subr.mxu0 0.0
        %1225 = vmatpush1.msra.mxu0 %v1214
        %1226 = vmatprep.subr.mxu0 0.0
        %1227 = vmatpush1.msra.mxu0 0.0
        %1228 = vmatprep.subr.mxu0 0.0
        %1229 = vmatpush1.msra.mxu0 0.0
        %1230 = vmatprep.subr.mxu0 0.0
        %1231 = vmatpush1.msra.mxu0 0.0
        %1232 = vmatprep.subr.mxu0 0.0
        %1233 = vmatpush1.msra.mxu0 0.0
        %1234 = vmatprep.subr.mxu0 0.0
        %1235 = vmatpush1.msra.mxu0 0.0
        %1236 = vmatprep.subr.mxu0 0.0
        %1237 = vmatpush1.msra.mxu0 0.0
        %1238 = vmatprep.subr.mxu0 0.0
        %1239 = vmatpush1.msra.mxu0 0.0
        %1240 = vmatprep.subr.mxu0 0.0
        %1241 = vmatpush1.msra.mxu0 0.0
        %1242 = vmatprep.subr.mxu0 0.0
        %1243 = vmatpush1.msra.mxu0 0.0
        %1244 = vmatprep.subr.mxu0 0.0
        %1245 = vmatpush1.msra.mxu0 0.0
        %1246 = vmatprep.subr.mxu0 0.0
        %1247 = vmatpush1.msra.mxu0 0.0
        %1248 = vmatprep.subr.mxu0 0.0
        %1249 = vmatpush1.msra.mxu0 0.0
        %1250 = vmatprep.subr.mxu0 0.0
        %1251 = vmatpush1.msra.mxu0 0.0
        %1252 = vmatprep.subr.mxu0 0.0
        %1253 = vmatpush1.msra.mxu0 0.0
        %1254 = vmatprep.subr.mxu0 0.0
        %1255 = vmatpush1.msra.mxu0 0.0
        %1256 = vmatprep.subr.mxu0 0.0
        %1257 = vmatpush1.msra.mxu0 0.0
        %1258 = vmatprep.subr.mxu0 0.0
        %1259 = vmatpush1.msra.mxu0 0.0
        %1260 = vmatprep.subr.mxu0 0.0
        %1261 = vmatpush1.msra.mxu0 0.0
        %1262 = vmatprep.subr.mxu0 0.0
        %1263 = vmatpush1.msra.mxu0 0.0
        %1264 = vmatprep.subr.mxu0 0.0
        %1265 = vmatpush1.msra.mxu0 0.0
        %1266 = vmatprep.subr.mxu0 0.0
        %1267 = vmatpush1.msra.mxu0 0.0
        %1268 = vmatprep.subr.mxu0 0.0
        %1269 = vmatpush1.msra.mxu0 0.0
        %1270 = vmatprep.subr.mxu0 0.0
        %1271 = vmatpush1.msra.mxu0 0.0
        %1272 = vmatprep.subr.mxu0 0.0
        %1273 = vmatpush1.msra.mxu0 0.0
        %1274 = vmatprep.subr.mxu0 0.0
        %1275 = vmatpush1.msra.mxu0 0.0
        %1276 = vmatprep.subr.mxu0 0.0
        %1277 = vmatpush1.msra.mxu0 0.0
        %1278 = vmatprep.subr.mxu0 0.0
        %1279 = vmatpush1.msra.mxu0 0.0
        %1280 = vmatprep.mubr.f32.mxu0 0.0
        %1281 = vmatmul.mubr.f32.gmra.mrb[0].mxu0 %v1117
        %v1282 = vpop.f32.mrb[0].mxu0
        %v1283 = vadd.f32 %v1113, %v1282
        %v1284 = vpop.f32.mrb[0].mxu0
        %1285 = vmatprep.mubr.f32.mxu0 0.0
        %1286 = vmatmul.mubr.f32.gmra.mrb[0].mxu0 %v1120
        %v1287 = vpop.f32.mrb[0].mxu0
        %v1288 = vadd.f32 %v1113, %v1287
        %v1289 = vpop.f32.mrb[0].mxu0
        %1290 = vmatprep.mubr.f32.mxu0 0.0
        %1291 = vmatmul.mubr.f32.gmra.mrb[0].mxu0 %v1123
        %v1292 = vpop.f32.mrb[0].mxu0
        %v1293 = vadd.f32 %v1113, %v1292
        %v1294 = vpop.f32.mrb[0].mxu0
        %1295 = vmatprep.mubr.f32.mxu0 0.0
        %1296 = vmatmul.mubr.f32.gmra.mrb[0].mxu0 %v1126
        %v1297 = vpop.f32.mrb[0].mxu0
        %v1298 = vadd.f32 %v1113, %v1297
        %v1299 = vpop.f32.mrb[0].mxu0
        %1300 = vmatprep.mubr.f32.mxu0 0.0
        %1301 = vmatmul.mubr.f32.gmra.mrb[0].mxu0 %v1129
        %v1302 = vpop.f32.mrb[0].mxu0
        %v1303 = vadd.f32 %v1113, %v1302
        %v1304 = vpop.f32.mrb[0].mxu0
        %1305 = vmatprep.mubr.f32.mxu0 0.0
        %1306 = vmatmul.mubr.f32.gmra.mrb[0].mxu0 %v1132
        %v1307 = vpop.f32.mrb[0].mxu0
        %v1308 = vadd.f32 %v1113, %v1307
        %v1309 = vpop.f32.mrb[0].mxu0
        %1310 = vmatprep.mubr.f32.mxu0 0.0
        %1311 = vmatmul.mubr.f32.gmra.mrb[0].mxu0 %v1135
        %v1312 = vpop.f32.mrb[0].mxu0
        %v1313 = vadd.f32 %v1113, %v1312
        %v1314 = vpop.f32.mrb[0].mxu0
        %1315 = vmatprep.mubr.f32.mxu0 0.0
        %1316 = vmatmul.mubr.f32.gmra.mrb[0].mxu0 %v1138
        %v1317 = vpop.f32.mrb[0].mxu0
        %v1318 = vadd.f32 %v1113, %v1317
        %v1319 = vpop.f32.mrb[0].mxu0
        %1320 = vmatprep.mubr.f32.mxu0 0.0
        %1321 = vmatmul.mubr.f32.gmra.mrb[0].mxu0 %v1141
        %v1322 = vpop.f32.mrb[0].mxu0
        %v1323 = vadd.f32 %v1113, %v1322
        %v1324 = vpop.f32.mrb[0].mxu0
        %1325 = vmatprep.mubr.f32.mxu0 0.0
        %1326 = vmatmul.mubr.f32.gmra.mrb[0].mxu0 %v1144
        %v1327 = vpop.f32.mrb[0].mxu0
        %v1328 = vadd.f32 %v1113, %v1327
        %v1329 = vpop.f32.mrb[0].mxu0
        %1330 = vmatprep.mubr.f32.mxu0 0.0
        %1331 = vmatmul.mubr.f32.gmra.mrb[0].mxu0 %v1147
        %v1332 = vpop.f32.mrb[0].mxu0
        %v1333 = vadd.f32 %v1113, %v1332
        %v1334 = vpop.f32.mrb[0].mxu0
        %1335 = vmatprep.mubr.f32.mxu0 0.0
        %1336 = vmatmul.mubr.f32.gmra.mrb[0].mxu0 %v1150
        %v1337 = vpop.f32.mrb[0].mxu0
        %v1338 = vadd.f32 %v1113, %v1337
        %v1339 = vpop.f32.mrb[0].mxu0
        %1340 = vmatprep.mubr.f32.mxu0 0.0
        %1341 = vmatmul.mubr.f32.gmra.mrb[0].mxu0 %v1153
        %v1342 = vpop.f32.mrb[0].mxu0
        %v1343 = vadd.f32 %v1113, %v1342
        %v1344 = vpop.f32.mrb[0].mxu0
        %1345 = vmatprep.mubr.f32.mxu0 0.0
        %1346 = vmatmul.mubr.f32.gmra.mrb[0].mxu0 %v1156
        %v1347 = vpop.f32.mrb[0].mxu0
        %v1348 = vadd.f32 %v1113, %v1347
        %v1349 = vpop.f32.mrb[0].mxu0
        %1350 = vmatprep.mubr.f32.mxu0 0.0
        %1351 = vmatmul.mubr.f32.gmra.mrb[0].mxu0 %v1159
        %v1352 = vpop.f32.mrb[0].mxu0
        %v1353 = vadd.f32 %v1113, %v1352
        %v1354 = vpop.f32.mrb[0].mxu0
        %1355 = vmatprep.mubr.f32.mxu0 0.0
        %1356 = vmatmul.mubr.f32.gmra.mrb[0].mxu0 %v1162
        %v1357 = vpop.f32.mrb[0].mxu0
        %v1358 = vadd.f32 %v1113, %v1357
        %v1359 = vpop.f32.mrb[0].mxu0
        %1360 = vmatprep.mubr.f32.mxu0 0.0
        %1361 = vmatmul.mubr.f32.gmra.mrb[0].mxu0 %v1165
        %v1362 = vpop.f32.mrb[0].mxu0
        %v1363 = vadd.f32 %v1113, %v1362
        %v1364 = vpop.f32.mrb[0].mxu0
        %1365 = vmatprep.mubr.f32.mxu0 0.0
        %1366 = vmatmul.mubr.f32.gmra.mrb[0].mxu0 %v1168
        %v1367 = vpop.f32.mrb[0].mxu0
        %v1368 = vadd.f32 %v1113, %v1367
        %v1369 = vpop.f32.mrb[0].mxu0
        %1370 = vmatprep.mubr.f32.mxu0 0.0
        %1371 = vmatmul.mubr.f32.gmra.mrb[0].mxu0 %v1171
        %v1372 = vpop.f32.mrb[0].mxu0
        %v1373 = vadd.f32 %v1113, %v1372
        %v1374 = vpop.f32.mrb[0].mxu0
        %1375 = vmatprep.mubr.f32.mxu0 0.0
        %1376 = vmatmul.mubr.f32.gmra.mrb[0].mxu0 %v1174
        %v1377 = vpop.f32.mrb[0].mxu0
        %v1378 = vadd.f32 %v1113, %v1377
        %v1379 = vpop.f32.mrb[0].mxu0
        %1380 = vmatprep.mubr.f32.mxu0 0.0
        %1381 = vmatmul.mubr.f32.gmra.mrb[0].mxu0 %v1177
        %v1382 = vpop.f32.mrb[0].mxu0
        %v1383 = vadd.f32 %v1113, %v1382
        %v1384 = vpop.f32.mrb[0].mxu0
        %1385 = vmatprep.mubr.f32.mxu0 0.0
        %1386 = vmatmul.mubr.f32.gmra.mrb[0].mxu0 %v1180
        %v1387 = vpop.f32.mrb[0].mxu0
        %v1388 = vadd.f32 %v1113, %v1387
        %v1389 = vpop.f32.mrb[0].mxu0
        %1390 = vmatprep.mubr.f32.mxu0 0.0
        %1391 = vmatmul.mubr.f32.gmra.mrb[0].mxu0 %v1183
        %v1392 = vpop.f32.mrb[0].mxu0
        %v1393 = vadd.f32 %v1113, %v1392
        %v1394 = vpop.f32.mrb[0].mxu0
        %1395 = vmatprep.mubr.f32.mxu0 0.0
        %1396 = vmatmul.mubr.f32.gmra.mrb[0].mxu0 %v1186
        %v1397 = vpop.f32.mrb[0].mxu0
        %v1398 = vadd.f32 %v1113, %v1397
        %v1399 = vpop.f32.mrb[0].mxu0
        %1400 = vmatprep.mubr.f32.mxu0 0.0
        %1401 = vmatmul.mubr.f32.gmra.mrb[0].mxu0 %v1189
        %v1402 = vpop.f32.mrb[0].mxu0
        %v1403 = vadd.f32 %v1113, %v1402
        %v1404 = vpop.f32.mrb[0].mxu0
        %1405 = vmatprep.mubr.f32.mxu0 0.0
        %1406 = vmatmul.mubr.f32.gmra.mrb[0].mxu0 %v1192
        %v1407 = vpop.f32.mrb[0].mxu0
        %v1408 = vadd.f32 %v1113, %v1407
        %v1409 = vpop.f32.mrb[0].mxu0
        %1410 = vmatprep.mubr.f32.mxu0 0.0
        %1411 = vmatmul.mubr.f32.gmra.mrb[0].mxu0 %v1195
        %v1412 = vpop.f32.mrb[0].mxu0
        %v1413 = vadd.f32 %v1113, %v1412
        %v1414 = vpop.f32.mrb[0].mxu0
        %1415 = vmatprep.mubr.f32.mxu0 0.0
        %1416 = vmatmul.mubr.f32.gmra.mrb[0].mxu0 %v1198
        %v1417 = vpop.f32.mrb[0].mxu0
        %v1418 = vadd.f32 %v1113, %v1417
        %v1419 = vpop.f32.mrb[0].mxu0
        %1420 = vmatprep.mubr.f32.mxu0 0.0
        %1421 = vmatmul.mubr.f32.gmra.mrb[0].mxu0 %v1201
        %v1422 = vpop.f32.mrb[0].mxu0
        %v1423 = vadd.f32 %v1113, %v1422
        %v1424 = vpop.f32.mrb[0].mxu0
        %1425 = vmatprep.mubr.f32.mxu0 0.0
        %1426 = vmatmul.mubr.f32.gmra.mrb[0].mxu0 %v1204
        %v1427 = vpop.f32.mrb[0].mxu0
        %v1428 = vadd.f32 %v1113, %v1427
        %v1429 = vpop.f32.mrb[0].mxu0
        %1430 = vmatprep.mubr.f32.mxu0 0.0
        %1431 = vmatmul.mubr.f32.gmra.mrb[0].mxu0 %v1207
        %v1432 = vpop.f32.mrb[0].mxu0
        %v1433 = vadd.f32 %v1113, %v1432
        %v1434 = vpop.f32.mrb[0].mxu0
        %1435 = vmatprep.mubr.f32.mxu0 0.0
        %1436 = vmatmul.mubr.f32.gmra.mrb[0].mxu0 %v1210
        %v1437 = vpop.f32.mrb[0].mxu0
        %v1438 = vadd.f32 %v1113, %v1437
        %v1439 = vpop.f32.mrb[0].mxu0
        %1440 = vdwg.mxu0
        %vm1441 = vcmp.ge.f32.partialorder %v1283, 0.0
        %vm1442 = vcmp.ge.f32.partialorder %v1288, 0.0
        %vm1443 = vcmp.ge.f32.partialorder %v1293, 0.0
        %vm1444 = vcmp.ge.f32.partialorder %v1298, 0.0
        %vm1445 = vcmp.ge.f32.partialorder %v1303, 0.0
        %vm1446 = vcmp.ge.f32.partialorder %v1308, 0.0
        %vm1447 = vcmp.ge.f32.partialorder %v1313, 0.0
        %vm1448 = vcmp.ge.f32.partialorder %v1318, 0.0
        %vm1449 = vcmp.ge.f32.partialorder %v1323, 0.0
        %vm1450 = vcmp.ge.f32.partialorder %v1328, 0.0
        %vm1451 = vcmp.ge.f32.partialorder %v1333, 0.0
        %vm1452 = vcmp.ge.f32.partialorder %v1338, 0.0
        %vm1453 = vcmp.ge.f32.partialorder %v1343, 0.0
        %vm1454 = vcmp.ge.f32.partialorder %v1348, 0.0
        %vm1455 = vcmp.ge.f32.partialorder %v1353, 0.0
        %vm1456 = vcmp.ge.f32.partialorder %v1358, 0.0
        %vm1457 = vcmp.ge.f32.partialorder %v1363, 0.0
        %vm1458 = vcmp.ge.f32.partialorder %v1368, 0.0
        %vm1459 = vcmp.ge.f32.partialorder %v1373, 0.0
        %vm1460 = vcmp.ge.f32.partialorder %v1378, 0.0
        %vm1461 = vcmp.ge.f32.partialorder %v1383, 0.0
        %vm1462 = vcmp.ge.f32.partialorder %v1388, 0.0
        %vm1463 = vcmp.ge.f32.partialorder %v1393, 0.0
        %vm1464 = vcmp.ge.f32.partialorder %v1398, 0.0
        %vm1465 = vcmp.ge.f32.partialorder %v1403, 0.0
        %vm1466 = vcmp.ge.f32.partialorder %v1408, 0.0
        %vm1467 = vcmp.ge.f32.partialorder %v1413, 0.0
        %vm1468 = vcmp.ge.f32.partialorder %v1418, 0.0
        %vm1469 = vcmp.ge.f32.partialorder %v1423, 0.0
        %vm1470 = vcmp.ge.f32.partialorder %v1428, 0.0
        %vm1471 = vcmp.ge.f32.partialorder %v1433, 0.0
        %vm1472 = vcmp.ge.f32.partialorder %v1438, 0.0
        %v1473 = vmul.f32 %v1283, 0.1
        %v1474 = vmul.f32 %v1288, 0.1
        %v1475 = vmul.f32 %v1293, 0.1
        %v1476 = vmul.f32 %v1298, 0.1
        %v1477 = vmul.f32 %v1303, 0.1
        %v1478 = vmul.f32 %v1308, 0.1
        %v1479 = vmul.f32 %v1313, 0.1
        %v1480 = vmul.f32 %v1318, 0.1
        %v1481 = vmul.f32 %v1323, 0.1
        %v1482 = vmul.f32 %v1328, 0.1
        %v1483 = vmul.f32 %v1333, 0.1
        %v1484 = vmul.f32 %v1338, 0.1
        %v1485 = vmul.f32 %v1343, 0.1
        %v1486 = vmul.f32 %v1348, 0.1
        %v1487 = vmul.f32 %v1353, 0.1
        %v1488 = vmul.f32 %v1358, 0.1
        %v1489 = vmul.f32 %v1363, 0.1
        %v1490 = vmul.f32 %v1368, 0.1
        %v1491 = vmul.f32 %v1373, 0.1
        %v1492 = vmul.f32 %v1378, 0.1
        %v1493 = vmul.f32 %v1383, 0.1
        %v1494 = vmul.f32 %v1388, 0.1
        %v1495 = vmul.f32 %v1393, 0.1
        %v1496 = vmul.f32 %v1398, 0.1
        %v1497 = vmul.f32 %v1403, 0.1
        %v1498 = vmul.f32 %v1408, 0.1
        %v1499 = vmul.f32 %v1413, 0.1
        %v1500 = vmul.f32 %v1418, 0.1
        %v1501 = vmul.f32 %v1423, 0.1
        %v1502 = vmul.f32 %v1428, 0.1
        %v1503 = vmul.f32 %v1433, 0.1
        %v1504 = vmul.f32 %v1438, 0.1
        %v1505 = vsel %vm1441, %v1283, %v1473
        %v1506 = vsel %vm1442, %v1288, %v1474
        %v1507 = vsel %vm1443, %v1293, %v1475
        %v1508 = vsel %vm1444, %v1298, %v1476
        %v1509 = vsel %vm1445, %v1303, %v1477
        %v1510 = vsel %vm1446, %v1308, %v1478
        %v1511 = vsel %vm1447, %v1313, %v1479
        %v1512 = vsel %vm1448, %v1318, %v1480
        %v1513 = vsel %vm1449, %v1323, %v1481
        %v1514 = vsel %vm1450, %v1328, %v1482
        %v1515 = vsel %vm1451, %v1333, %v1483
        %v1516 = vsel %vm1452, %v1338, %v1484
        %v1517 = vsel %vm1453, %v1343, %v1485
        %v1518 = vsel %vm1454, %v1348, %v1486
        %v1519 = vsel %vm1455, %v1353, %v1487
        %v1520 = vsel %vm1456, %v1358, %v1488
        %v1521 = vsel %vm1457, %v1363, %v1489
        %v1522 = vsel %vm1458, %v1368, %v1490
        %v1523 = vsel %vm1459, %v1373, %v1491
        %v1524 = vsel %vm1460, %v1378, %v1492
        %v1525 = vsel %vm1461, %v1383, %v1493
        %v1526 = vsel %vm1462, %v1388, %v1494
        %v1527 = vsel %vm1463, %v1393, %v1495
        %v1528 = vsel %vm1464, %v1398, %v1496
        %v1529 = vsel %vm1465, %v1403, %v1497
        %v1530 = vsel %vm1466, %v1408, %v1498
        %v1531 = vsel %vm1467, %v1413, %v1499
        %v1532 = vsel %vm1468, %v1418, %v1500
        %v1533 = vsel %vm1469, %v1423, %v1501
        %v1534 = vsel %vm1470, %v1428, %v1502
        %v1535 = vsel %vm1471, %v1433, %v1503
        %v1536 = vsel %vm1472, %v1438, %v1504
        %v1569 = vadd.f32 %v1505, %v347
        %v1570 = vadd.f32 %v1506, %v349
        %v1571 = vadd.f32 %v1507, %v352
        %v1572 = vadd.f32 %v1508, %v354
        %v1573 = vadd.f32 %v1509, %v357
        %v1574 = vadd.f32 %v1510, %v359
        %v1575 = vadd.f32 %v1511, %v362
        %v1576 = vadd.f32 %v1512, %v364
        %v1577 = vadd.f32 %v1513, %v367
        %v1578 = vadd.f32 %v1514, %v369
        %v1579 = vadd.f32 %v1515, %v372
        %v1580 = vadd.f32 %v1516, %v374
        %v1581 = vadd.f32 %v1517, %v377
        %v1582 = vadd.f32 %v1518, %v379
        %v1583 = vadd.f32 %v1519, %v382
        %v1584 = vadd.f32 %v1520, %v384
        %v1585 = vadd.f32 %v1521, %v387
        %v1586 = vadd.f32 %v1522, %v389
        %v1587 = vadd.f32 %v1523, %v392
        %v1588 = vadd.f32 %v1524, %v394
        %v1589 = vadd.f32 %v1525, %v397
        %v1590 = vadd.f32 %v1526, %v399
        %v1591 = vadd.f32 %v1527, %v402
        %v1592 = vadd.f32 %v1528, %v404
        %v1593 = vadd.f32 %v1529, %v407
        %v1594 = vadd.f32 %v1530, %v409
        %v1595 = vadd.f32 %v1531, %v412
        %v1596 = vadd.f32 %v1532, %v414
        %v1597 = vadd.f32 %v1533, %v417
        %v1598 = vadd.f32 %v1534, %v419
        %v1599 = vadd.f32 %v1535, %v422
        %v1600 = vadd.f32 %v1536, %v424
        %1601 = vst.msk [vmem:[%s229] sm:$0xff] %vm737, %v1569
        %1602 = vst.msk [vmem:[%s229 + $0x8] sm:$0xff] %vm737, %v1570
        %1603 = vst.msk [vmem:[%s229 + $0x10] sm:$0xff] %vm737, %v1571
        %1604 = vst.msk [vmem:[%s229 + $0x18] sm:$0xff] %vm737, %v1572
        %1605 = vst.msk [vmem:[%s229 + $0x20] sm:$0xff] %vm737, %v1573
        %1606 = vst.msk [vmem:[%s229 + $0x28] sm:$0xff] %vm737, %v1574
        %1607 = vst.msk [vmem:[%s229 + $0x30] sm:$0xff] %vm737, %v1575
        %1608 = vst.msk [vmem:[%s229 + $0x38] sm:$0xff] %vm737, %v1576
        %1609 = vst.msk [vmem:[%s229 + $0x40] sm:$0xff] %vm737, %v1577
        %1610 = vst.msk [vmem:[%s229 + $0x48] sm:$0xff] %vm737, %v1578
        %1611 = vst.msk [vmem:[%s229 + $0x50] sm:$0xff] %vm737, %v1579
        %1612 = vst.msk [vmem:[%s229 + $0x58] sm:$0xff] %vm737, %v1580
        %1613 = vst.msk [vmem:[%s229 + $0x60] sm:$0xff] %vm737, %v1581
        %1614 = vst.msk [vmem:[%s229 + $0x68] sm:$0xff] %vm737, %v1582
        %1615 = vst.msk [vmem:[%s229 + $0x70] sm:$0xff] %vm737, %v1583
        %1616 = vst.msk [vmem:[%s229 + $0x78] sm:$0xff] %vm737, %v1584
        %1617 = vst.msk [vmem:[%s229 + $0x80] sm:$0xff] %vm737, %v1585
        %1618 = vst.msk [vmem:[%s229 + $0x88] sm:$0xff] %vm737, %v1586
        %1619 = vst.msk [vmem:[%s229 + $0x90] sm:$0xff] %vm737, %v1587
        %1620 = vst.msk [vmem:[%s229 + $0x98] sm:$0xff] %vm737, %v1588
        %1621 = vst.msk [vmem:[%s229 + $0xa0] sm:$0xff] %vm737, %v1589
        %1622 = vst.msk [vmem:[%s229 + $0xa8] sm:$0xff] %vm737, %v1590
        %1623 = vst.msk [vmem:[%s229 + $0xb0] sm:$0xff] %vm737, %v1591
        %1624 = vst.msk [vmem:[%s229 + $0xb8] sm:$0xff] %vm737, %v1592
        %1625 = vst.msk [vmem:[%s229 + $0xc0] sm:$0xff] %vm737, %v1593
        %1626 = vst.msk [vmem:[%s229 + $0xc8] sm:$0xff] %vm737, %v1594
        %1627 = vst.msk [vmem:[%s229 + $0xd0] sm:$0xff] %vm737, %v1595
        %1628 = vst.msk [vmem:[%s229 + $0xd8] sm:$0xff] %vm737, %v1596
        %1629 = vst.msk [vmem:[%s229 + $0xe0] sm:$0xff] %vm737, %v1597
        %1630 = vst.msk [vmem:[%s229 + $0xe8] sm:$0xff] %vm737, %v1598
        %1631 = vst.msk [vmem:[%s229 + $0xf0] sm:$0xff] %vm737, %v1599
        %1632 = vst.msk [vmem:[%s229 + $0xf8] sm:$0xff] %vm737, %v1600
        %s1633 = sand.u32 %s111, 1
        %s1634 = scalar_lea.sflag [#allocation4], %s1633
        %s1635 = sand.u32 %s111, 1
        %s1636 = smul.addr %s1635, 256
        %s1637 = scalar_lea.vmem [#allocation8], %s1636
        // Predicated region
        $region45: #{tpu_custom_call.1} parent=31 // pred_check
          %p1638 = pneg %p121
        $region46: #{tpu_custom_call.1} parent=31 // pred_check_branch
          %1640 = sbr.rel (%p1638) target = $region48
        $region47: #{tpu_custom_call.1} parent=31 // pred_region
          %s1641 = smul.u32 32, %s26
          %s1643 = ssub.s32 4096, 4096
          %1644 = vsyncadd %s1634, %s1643
          %s1645 = smul.addr %s25, 32
          %s1646 = sadd.s32 %s1641, %s1645
          %s1647 = smul.addr %s1646, 128
          %s1648 = scalar_lea.hbm %s3, %s1647
          %s1649 = sshll.u32 %s1637, 4
          %s1650 = int_to_ptr.vmem [resolvable:$true] %s1649
          %1655 = dma.vmem_to_hbm [thread:$0]  %s1650, 4096, %s1648, %s1634, 128, 128, 8
        $region48: #{tpu_custom_call.1} parent=31 // pred_fallthru
          _
      $region32: #{tpu_custom_call.1} parent=5 // pred_fallthru
        _
      %p1656 = scmp.le.s32.totalorder 2, %s16
      // Predicated region
      $region49: #{tpu_custom_call.1} parent=5 // pred_check
        %p1657 = pneg %p1656
      $region50: #{tpu_custom_call.1} parent=5 // pred_check_branch
        %1659 = sbr.rel (%p1657) target = $region52
      $region51: #{tpu_custom_call.1} parent=5 // pred_region
        %s1660 = ssub.s32 %s16, 2
        // Predicated region
        $region53: #{tpu_custom_call.1} parent=51 // pred_check
          %p1661 = pneg %p127
        $region54: #{tpu_custom_call.1} parent=51 // pred_check_branch
          %1663 = sbr.rel (%p1661) target = $region56
        $region55: #{tpu_custom_call.1} parent=51 // pred_region
          %s1664 = sand.u32 %s112, 1
          %s1665 = scalar_lea.sflag [#allocation4], %s1664
          %s1666 = sand.u32 %s112, 1
          %s1667 = smul.addr %s1666, 256
          %s1668 = scalar_lea.vmem [#allocation8], %s1667
          %1669 = dma.done %s1665, 4096
        $region56: #{tpu_custom_call.1} parent=51 // pred_fallthru
          _
      $region52: #{tpu_custom_call.1} parent=5 // pred_fallthru
        _
    $region6: #{tpu_custom_call.1} parent=1 // loop_footer
      %s20 = sadd.s32 1, %s16
    $region7: #{tpu_custom_call.1} parent=1 // loop_footer_branch
      %15 = sbr.rel target = $region3
    $region8: #{tpu_custom_call.1} parent=1 // loop_exit
      _
    %1670 = vsyncpa [#allocation3], 1
    %s1671 = scalar_lea.sflag [#allocation3], 1
    %1672 = vsyncpa %s1671, 1
    %1673 = vsyncpa [#allocation6], 1
    %1674 = vsyncpa [#allocation4], 1
    %s1675 = scalar_lea.sflag [#allocation4], 1
    %1676 = vsyncpa %s1675, 1

</llo_original>
